<compile_context>
chip_gen: v7x
topology: tpu7x:2x2x1
jax: 0.10.0
libtpu: 0.0.40
codegen_flags: <defaults>
</compile_context>

<pallas_src>
import functools

import numpy as np
import jax
import jax.numpy as jnp
from jax import lax
from jax.experimental import pallas as pl
from jax.experimental.pallas import tpu as pltpu

# ---- module hyper-parameters (TextEncoderLayer(dim=32, dim_head=16, heads=4, ff_mult=4)) ----
DIM = 32
DIM_HEAD = 16
HEADS = 4
FF_MULT = 4
ATTN_INNER = DIM_HEAD * HEADS                              # 64
FF_INNER = DIM * FF_MULT                                   # 128
FUSED_OUT = ATTN_INNER + 2 * DIM_HEAD + 2 * FF_INNER       # 352
SCALE = DIM_HEAD ** (-0.5)
EPS = 1e-5
NEG_MAX = float(np.finfo(np.float32).max)   # reference mirrors torch masked_fill(-finfo.max)
MASK_VALUE = -1e30                          # saturating mask constant (no infs after row-max)

# Row cap per grid step.  sim/p/attn are (HEADS*bn, bn) f32 -> ~3 MB at bn=256, which fits the
# default scoped VMEM on v5e (16 MiB), v6e (32 MiB) and v7x (32 of 64 MiB) with headroom.
MAX_BLOCK_ROWS = 256

# MXU operand dtype: bf16 operands, f32 accumulation.  All non-matmul math stays f32.
MXU_DTYPE = jnp.bfloat16


def _text_encoder_layer_kernel(
        x_ref, wq_ref, wqr_ref, wk_ref, wkr_ref, wv_ref, wffi_ref, wout_ref,
        gamma_ref, beta_ref, cos_ref, sin_ref, lo_ref, hi_ref,
        o_ref, *, bn):
    # ---------------- LayerNorm (f32 VPU math) over the (bn, D) row slab ----------------
    x = x_ref[...]                                           # (bn, D)
    mu = jnp.mean(x, axis=-1, keepdims=True)
    var = jnp.mean((x - mu) ** 2, axis=-1, keepdims=True)
    xn = (x - mu) * lax.rsqrt(var + EPS)
    xn = xn * gamma_ref[...] + beta_ref[...]                 # (1, D) broadcasts
    xn_mx = xn.astype(MXU_DTYPE)

    def proj(w_ref):
        return jnp.dot(xn_mx, w_ref[...], preferred_element_type=jnp.float32)

    # ---------- projections: separate dots, so no misaligned (<128) lane slices ----------
    q = proj(wq_ref)        # (bn, H*DH)   attention scale already folded into the weight
    q_r = proj(wqr_ref)     # (bn, H*DH)   == rotate_half(q) (signed column-permuted weight)
    k = proj(wk_ref)        # (bn, DH)     multi-query: shared across heads
    k_r = proj(wkr_ref)     # (bn, DH)
    v = proj(wv_ref)        # (bn, DH)
    ffp = proj(wffi_ref)    # (bn, 2*FF_INNER)

    # ---------------- rotary embedding (f32 VPU), one small (bn, DH) table -----------------
    cos = cos_ref[...]
    sin = sin_ref[...]
    k_rope = k * cos + k_r * sin                             # (bn, DH)

    # RoPE per head + head stacking along ROWS: row r = h*bn + b*N + i
    q_heads = []
    for h in range(HEADS):
        qh = q[:, h * DIM_HEAD:(h + 1) * DIM_HEAD]
        qrh = q_r[:, h * DIM_HEAD:(h + 1) * DIM_HEAD]
        q_heads.append(qh * cos + qrh * sin)
    q_st = jnp.concatenate(q_heads, axis=0)                  # (H*bn, DH)
    # TODO(synk): if a profile at large bn shows XLU / ld-st saturated, replace the 16-lane
    # offset slices here and in attn_cat below with per-head dots or a pltpu.einshape relayout.

    # -------- attention: heads stacked along rows, one matmul each direction --------
    sim = lax.dot_general(
        q_st.astype(MXU_DTYPE), k_rope.astype(MXU_DTYPE),
        (((1,), (1,)), ((), ())),                 # contract DH, no transpose materialized
        preferred_element_type=jnp.float32)       # (H*bn, bn)

    # causal + same-batch mask built in-kernel: column iota vs per-row [lo, hi] bounds
    col = lax.broadcasted_iota(jnp.int32, sim.shape, 1)
    keep = (col >= lo_ref[...]) & (col <= hi_ref[...])
    sim = jnp.where(keep, sim, MASK_VALUE)

    sim = sim - jnp.max(sim, axis=-1, keepdims=True)
    p = jnp.exp(sim)
    denom = jnp.sum(p, axis=-1, keepdims=True)
    attn = p * pl.reciprocal(denom, approx=True)             # EUP reciprocal, no vector divide

    out_st = jnp.dot(attn.astype(MXU_DTYPE), v.astype(MXU_DTYPE),
                     preferred_element_type=jnp.float32)     # (H*bn, DH)

    # un-stack heads back onto lanes: (bn, H*DH), head-major like the reference 'b n (h d)'
    attn_cat = jnp.concatenate(
        [out_st[h * bn:(h + 1) * bn, :] for h in range(HEADS)], axis=1)

    # ---------------- SwiGLU FF (splits land exactly on lane 128) ----------------
    ff_x = ffp[:, :FF_INNER]
    gate = ffp[:, FF_INNER:]
    swiglu = jax.nn.silu(gate) * ff_x                        # f32 VPU/EUP math

    # single fused output matmul: [swiglu | attn_cat] @ [w_ff_out ; w_attn_out]
    # (swiglu first so the concat seam is exactly at lane 128 -> vreg-aligned)
    merged = jnp.concatenate([swiglu, attn_cat], axis=1).astype(MXU_DTYPE)   # (bn, 192)
    o_ref[...] = jnp.dot(merged, wout_ref[...], preferred_element_type=jnp.float32)
    # NOTE: output stays (bn, 32) -> 32-lane masked stores; making it lane-dense is gated on a
    # profile (at D=32 the writeback is tiny and a relayout would cost about what it saves).
    # TODO(synk): optional attn_mask path not implemented (forward default attn_mask=None).
    # TODO(synk): for long sequences, tile KV flash-style instead of materializing (H*bn, bn).


def rotary_tables(n):
    inv_freq = 1.0 / (10000.0 ** (jnp.arange(0, DIM_HEAD, 2, dtype=jnp.float32) / DIM_HEAD))
    freqs = jnp.arange(n, dtype=jnp.float32)[:, None] * inv_freq[None, :]   # (N, DH/2)
    pos = jnp.concatenate([freqs, freqs], axis=-1)                          # (N, DH)
    return jnp.cos(pos), jnp.sin(pos)


def _rotate_half_columns(w):
    """Fold rotate_half into a projection weight: x @ result == rotate_half_per_head(x @ w).

    Exact: it is only a signed permutation of the weight columns (per DIM_HEAD block)."""
    blocks = []
    for h0 in range(0, w.shape[1], DIM_HEAD):
        blk = w[:, h0:h0 + DIM_HEAD]
        b1, b2 = blk[:, :DIM_HEAD // 2], blk[:, DIM_HEAD // 2:]
        blocks.append(jnp.concatenate([-b2, b1], axis=1))
    return jnp.concatenate(blocks, axis=1)


def _row_bounds(b_blk, n):
    """Per-row allowed column range [lo, hi] of the row-stacked score matrix.

    Row r = h*(b_blk*n) + b*n + i keeps columns c with b*n <= c <= b*n + i
    (same batch AND causal) -- mirrors the module's cached triu mask."""
    bn = b_blk * n
    r = np.arange(HEADS * bn)
    rowpos = r % bn
    q_pos = rowpos % n
    q_bat = rowpos // n
    lo = (q_bat * n).astype(np.int32).reshape(-1, 1)
    hi = (q_bat * n + q_pos).astype(np.int32).reshape(-1, 1)
    return jnp.asarray(lo), jnp.asarray(hi)


def _choose_b_blk(B, N):
    """Largest divisor of B with b_blk*N <= MAX_BLOCK_ROWS and bn % 8 == 0 whenever grid > 1."""
    max_b = max(1, MAX_BLOCK_ROWS // N)
    for cand in range(min(B, max_b), 0, -1):
        if B % cand:
            continue
        if cand == B or (cand * N) % 8 == 0:   # block == full array needs no (8,) alignment
            return cand
    # TODO(synk): pad B instead of falling back to one huge block for pathological (prime) B.
    return B


def text_encoder_layer(x, wf, wo, wff, gamma, beta):
    B, N, D = x.shape
    assert D == DIM

    b_blk = _choose_b_blk(B, N)
    bn = b_blk * N
    grid = B // b_blk

    # split the fused projection weight so the kernel never slices at misaligned lane offsets
    wq = wf[:, :ATTN_INNER]
    wk = wf[:, ATTN_INNER:ATTN_INNER + DIM_HEAD]
    wv = wf[:, ATTN_INNER + DIM_HEAD:ATTN_INNER + 2 * DIM_HEAD]
    wffi = wf[:, ATTN_INNER + 2 * DIM_HEAD:]

    wq_s = (wq * SCALE).astype(MXU_DTYPE)                      # fold attention scale into q proj
    wqr_s = (_rotate_half_columns(wq) * SCALE).astype(MXU_DTYPE)
    wk_c = wk.astype(MXU_DTYPE)
    wkr_c = _rotate_half_columns(wk).astype(MXU_DTYPE)
    wv_c = wv.astype(MXU_DTYPE)
    wffi_c = wffi.astype(MXU_DTYPE)
    # fused output weight: [w_ff_out ; w_attn_out] along rows -> single (192, D) matmul
    wout_c = jnp.concatenate([wff, wo], axis=0).astype(MXU_DTYPE)

    cos, sin = rotary_tables(N)                                # (N, DH)
    cos_b = jnp.tile(cos, (b_blk, 1))                          # (bn, DH), reused for all heads
    sin_b = jnp.tile(sin, (b_blk, 1))
    lo, hi = _row_bounds(b_blk, N)                             # (H*bn, 1) int32 each

    gamma2 = gamma.reshape(1, D)
    beta2 = beta.reshape(1, D)
    x2 = x.reshape(B * N, D)                                   # free XLA reshape outside the kernel

    kernel = functools.partial(_text_encoder_layer_kernel, bn=bn)
    full = lambda b: (0, 0)

    out2 = pl.pallas_call(
        kernel,
        out_shape=jax.ShapeDtypeStruct((B * N, D), jnp.float32),
        grid=(grid,),
        in_specs=[
            pl.BlockSpec((bn, D), lambda b: (b, 0)),             # x rows for this batch block
            pl.BlockSpec((D, ATTN_INNER), full),                 # wq  (scaled, bf16)
            pl.BlockSpec((D, ATTN_INNER), full),                 # wq_rot (scaled, bf16)
            pl.BlockSpec((D, DIM_HEAD), full),                   # wk
            pl.BlockSpec((D, DIM_HEAD), full),                   # wk_rot
            pl.BlockSpec((D, DIM_HEAD), full),                   # wv
            pl.BlockSpec((D, 2 * FF_INNER), full),               # w_ff_in (SwiGLU)
            pl.BlockSpec((FF_INNER + ATTN_INNER, D), full),      # fused [ff_out ; attn_out]
            pl.BlockSpec((1, D), full),                          # layernorm gamma
            pl.BlockSpec((1, D), full),                          # layernorm beta
            pl.BlockSpec((bn, DIM_HEAD), full),                  # rotary cos (per head reuse)
            pl.BlockSpec((bn, DIM_HEAD), full),                  # rotary sin
            pl.BlockSpec((HEADS * bn, 1), full),                 # per-row mask lower bound
            pl.BlockSpec((HEADS * bn, 1), full),                 # per-row mask upper bound
        ],
        out_specs=pl.BlockSpec((bn, D), lambda b: (b, 0)),
        compiler_params=pltpu.CompilerParams(
            dimension_semantics=("parallel",),
            vmem_limit_bytes=32 * 1024 * 1024),                  # headroom vs v5e 16 MiB default
    )(x2, wq_s, wqr_s, wk_c, wkr_c, wv_c, wffi_c, wout_c,
      gamma2, beta2, cos_b, sin_b, lo, hi)

    return out2.reshape(B, N, D)


# ---------------- pure-JAX reference (mirrors the PyTorch forward, f32) ----------------
def reference(x, wf, wo, wff, gamma, beta):
    B, N, D = x.shape
    mu = jnp.mean(x, -1, keepdims=True)
    var = jnp.mean((x - mu) ** 2, -1, keepdims=True)
    xn = (x - mu) / jnp.sqrt(var + EPS) * gamma + beta
    fused = xn @ wf
    q = fused[..., :ATTN_INNER]
    k = fused[..., ATTN_INNER:ATTN_INNER + DIM_HEAD]
    v = fused[..., ATTN_INNER + DIM_HEAD:ATTN_INNER + 2 * DIM_HEAD]
    ff = fused[..., ATTN_INNER + 2 * DIM_HEAD:]
    q = q.reshape(B, N, HEADS, DIM_HEAD).transpose(0, 2, 1, 3)   # b h n d
    cos, sin = rotary_tables(N)

    def rot_half(t):
        t1, t2 = jnp.split(t, 2, axis=-1)
        return jnp.concatenate([-t2, t1], axis=-1)

    def rope(t):
        return t * cos + rot_half(t) * sin

    q = rope(q) * SCALE
    k = rope(k)
    sim = jnp.einsum('bhid,bjd->bhij', q, k)
    causal = jnp.triu(jnp.ones((N, N), bool), 1)
    sim = jnp.where(causal, -NEG_MAX, sim)
    sim = sim - jnp.max(sim, -1, keepdims=True)
    attn = jax.nn.softmax(sim, -1)
    out = jnp.einsum('bhij,bjd->bhid', attn, v)
    out = out.transpose(0, 2, 1, 3).reshape(B, N, ATTN_INNER)
    ff_x, gate = jnp.split(ff, 2, axis=-1)
    ff_o = (jax.nn.silu(gate) * ff_x) @ wff
    return out @ wo + ff_o


if __name__ == "__main__":
    key = jax.random.PRNGKey(0)
    kx, k1, k2, k3 = jax.random.split(key, 4)
    B, N = 2, 8

    x = jax.random.normal(kx, (B, N, DIM), dtype=jnp.float32)
    # deterministic synthetic parameters (shapes match TextEncoderLayer.__init__, stored as (in, out))
    wf = jax.random.normal(k1, (DIM, FUSED_OUT), dtype=jnp.float32) * 0.05
    wo = jax.random.normal(k2, (ATTN_INNER, DIM), dtype=jnp.float32) * 0.05
    wff = jax.random.normal(k3, (FF_INNER, DIM), dtype=jnp.float32) * 0.05
    gamma = jnp.ones((DIM,), jnp.float32)   # nn.LayerNorm default weight
    beta = jnp.zeros((DIM,), jnp.float32)   # nn.LayerNorm default bias

    out = jax.block_until_ready(text_encoder_layer(x, wf, wo, wff, gamma, beta))
    ref = reference(x, wf, wo, wff, gamma, beta)

    assert out.shape == (B, N, DIM)
    # tolerance 1e-2: bf16 MXU operands (f32 accumulation) + approx (EUP) softmax reciprocal
    # trade ~1e-3-level accuracy for 2-4x MXU throughput; f32 reference remains the ground truth.
    assert np.allclose(np.asarray(out), np.asarray(ref), rtol=1e-2, atol=1e-2), \
        "Pallas kernel output does not match reference"
    print("KERNEL_OK")
</pallas_src>

<mosaic_0001>
module attributes {stable_mosaic.version = 11 : i64} {
  func.func @_text_encoder_layer_kernel(%arg0: i32, %arg1: memref<16x32xf32, #tpu.memory_space<vmem>>, %arg2: memref<32x64xbf16, #tpu.memory_space<vmem>>, %arg3: memref<32x64xbf16, #tpu.memory_space<vmem>>, %arg4: memref<32x16xbf16, #tpu.memory_space<vmem>>, %arg5: memref<32x16xbf16, #tpu.memory_space<vmem>>, %arg6: memref<32x16xbf16, #tpu.memory_space<vmem>>, %arg7: memref<32x256xbf16, #tpu.memory_space<vmem>>, %arg8: memref<192x32xbf16, #tpu.memory_space<vmem>>, %arg9: memref<1x32xf32, #tpu.memory_space<vmem>>, %arg10: memref<1x32xf32, #tpu.memory_space<vmem>>, %arg11: memref<16x16xf32, #tpu.memory_space<vmem>>, %arg12: memref<16x16xf32, #tpu.memory_space<vmem>>, %arg13: memref<64x1xi32, #tpu.memory_space<vmem>>, %arg14: memref<64x1xi32, #tpu.memory_space<vmem>>, %arg15: memref<16x32xf32, #tpu.memory_space<vmem>>) attributes {dimension_semantics = [#tpu.dimension_semantics<parallel>], iteration_bounds = array<i64: 1>, scalar_prefetch = 0 : i64, scratch_operands = 0 : i64, tpu.core_type = #tpu.core_type<tc>, window_params = [{transform_indices = @transform_0, window_bounds = array<i64: 16, 32>}, {pipeline_mode = #tpu.pipeline_mode<synchronous>, transform_indices = @transform_1, window_bounds = array<i64: 32, 64>}, {pipeline_mode = #tpu.pipeline_mode<synchronous>, transform_indices = @transform_2, window_bounds = array<i64: 32, 64>}, {pipeline_mode = #tpu.pipeline_mode<synchronous>, transform_indices = @transform_3, window_bounds = array<i64: 32, 16>}, {pipeline_mode = #tpu.pipeline_mode<synchronous>, transform_indices = @transform_4, window_bounds = array<i64: 32, 16>}, {pipeline_mode = #tpu.pipeline_mode<synchronous>, transform_indices = @transform_5, window_bounds = array<i64: 32, 16>}, {pipeline_mode = #tpu.pipeline_mode<synchronous>, transform_indices = @transform_6, window_bounds = array<i64: 32, 256>}, {pipeline_mode = #tpu.pipeline_mode<synchronous>, transform_indices = @transform_7, window_bounds = array<i64: 192, 32>}, {pipeline_mode = #tpu.pipeline_mode<synchronous>, transform_indices = @transform_8, window_bounds = array<i64: 1, 32>}, {pipeline_mode = #tpu.pipeline_mode<synchronous>, transform_indices = @transform_9, window_bounds = array<i64: 1, 32>}, {pipeline_mode = #tpu.pipeline_mode<synchronous>, transform_indices = @transform_10, window_bounds = array<i64: 16, 16>}, {pipeline_mode = #tpu.pipeline_mode<synchronous>, transform_indices = @transform_11, window_bounds = array<i64: 16, 16>}, {pipeline_mode = #tpu.pipeline_mode<synchronous>, transform_indices = @transform_12, window_bounds = array<i64: 64, 1>}, {pipeline_mode = #tpu.pipeline_mode<synchronous>, transform_indices = @transform_13, window_bounds = array<i64: 64, 1>}, {transform_indices = @transform_14, window_bounds = array<i64: 16, 32>}]} {
    %c0 = arith.constant 0 : index
    %c0_0 = arith.constant 0 : index
    %0 = vector.load %arg1[%c0, %c0_0] : memref<16x32xf32, #tpu.memory_space<vmem>>, vector<16x32xf32>
    %cst = arith.constant dense<0.000000e+00> : vector<16xf32>
    %1 = vector.multi_reduction <add>, %0, %cst [1] : vector<16x32xf32> to vector<16xf32>
    %2 = vector.shape_cast %1 : vector<16xf32> to vector<16x1xf32>
    %cst_1 = arith.constant 3.200000e+01 : f32
    %3 = vector.broadcast %cst_1 : f32 to vector<16x1xf32>
    %4 = arith.divf %2, %3 : vector<16x1xf32>
    %5 = vector.broadcast %4 : vector<16x1xf32> to vector<16x32xf32>
    %6 = arith.subf %0, %5 : vector<16x32xf32>
    %7 = arith.mulf %6, %6 : vector<16x32xf32>
    %cst_2 = arith.constant dense<0.000000e+00> : vector<16xf32>
    %8 = vector.multi_reduction <add>, %7, %cst_2 [1] : vector<16x32xf32> to vector<16xf32>
    %9 = vector.shape_cast %8 : vector<16xf32> to vector<16x1xf32>
    %cst_3 = arith.constant 3.200000e+01 : f32
    %10 = vector.broadcast %cst_3 : f32 to vector<16x1xf32>
    %11 = arith.divf %9, %10 : vector<16x1xf32>
    %12 = vector.broadcast %4 : vector<16x1xf32> to vector<16x32xf32>
    %13 = arith.subf %0, %12 : vector<16x32xf32>
    %cst_4 = arith.constant 9.99999974E-6 : f32
    %14 = vector.broadcast %cst_4 : f32 to vector<16x1xf32>
    %15 = arith.addf %11, %14 : vector<16x1xf32>
    %16 = math.rsqrt %15 : vector<16x1xf32>
    %17 = vector.broadcast %16 : vector<16x1xf32> to vector<16x32xf32>
    %18 = arith.mulf %13, %17 : vector<16x32xf32>
    %c0_5 = arith.constant 0 : index
    %c0_6 = arith.constant 0 : index
    %19 = vector.load %arg9[%c0_5, %c0_6] : memref<1x32xf32, #tpu.memory_space<vmem>>, vector<1x32xf32>
    %20 = vector.broadcast %19 : vector<1x32xf32> to vector<16x32xf32>
    %21 = arith.mulf %18, %20 : vector<16x32xf32>
    %c0_7 = arith.constant 0 : index
    %c0_8 = arith.constant 0 : index
    %22 = vector.load %arg10[%c0_7, %c0_8] : memref<1x32xf32, #tpu.memory_space<vmem>>, vector<1x32xf32>
    %23 = vector.broadcast %22 : vector<1x32xf32> to vector<16x32xf32>
    %24 = arith.addf %21, %23 : vector<16x32xf32>
    %25 = arith.truncf %24 : vector<16x32xf32> to vector<16x32xbf16>
    %c0_9 = arith.constant 0 : index
    %c0_10 = arith.constant 0 : index
    %26 = vector.load %arg2[%c0_9, %c0_10] : memref<32x64xbf16, #tpu.memory_space<vmem>>, vector<32x64xbf16>
    %cst_11 = arith.constant dense<0.000000e+00> : vector<16x64xf32>
    %27 = tpu.matmul %25, %26, %cst_11 {dimension_numbers = #tpu.dot_dimension_numbers<[1], [0], [0], [1], [0, 0, 1, 1], [], []>} : vector<16x32xbf16>, vector<32x64xbf16>, vector<16x64xf32> -> vector<16x64xf32>
    %c0_12 = arith.constant 0 : index
    %c0_13 = arith.constant 0 : index
    %28 = vector.load %arg3[%c0_12, %c0_13] : memref<32x64xbf16, #tpu.memory_space<vmem>>, vector<32x64xbf16>
    %cst_14 = arith.constant dense<0.000000e+00> : vector<16x64xf32>
    %29 = tpu.matmul %25, %28, %cst_14 {dimension_numbers = #tpu.dot_dimension_numbers<[1], [0], [0], [1], [0, 0, 1, 1], [], []>} : vector<16x32xbf16>, vector<32x64xbf16>, vector<16x64xf32> -> vector<16x64xf32>
    %c0_15 = arith.constant 0 : index
    %c0_16 = arith.constant 0 : index
    %30 = vector.load %arg4[%c0_15, %c0_16] : memref<32x16xbf16, #tpu.memory_space<vmem>>, vector<32x16xbf16>
    %cst_17 = arith.constant dense<0.000000e+00> : vector<16x16xf32>
    %31 = tpu.matmul %25, %30, %cst_17 {dimension_numbers = #tpu.dot_dimension_numbers<[1], [0], [0], [1], [0, 0, 1, 1], [], []>} : vector<16x32xbf16>, vector<32x16xbf16>, vector<16x16xf32> -> vector<16x16xf32>
    %c0_18 = arith.constant 0 : index
    %c0_19 = arith.constant 0 : index
    %32 = vector.load %arg5[%c0_18, %c0_19] : memref<32x16xbf16, #tpu.memory_space<vmem>>, vector<32x16xbf16>
    %cst_20 = arith.constant dense<0.000000e+00> : vector<16x16xf32>
    %33 = tpu.matmul %25, %32, %cst_20 {dimension_numbers = #tpu.dot_dimension_numbers<[1], [0], [0], [1], [0, 0, 1, 1], [], []>} : vector<16x32xbf16>, vector<32x16xbf16>, vector<16x16xf32> -> vector<16x16xf32>
    %c0_21 = arith.constant 0 : index
    %c0_22 = arith.constant 0 : index
    %34 = vector.load %arg6[%c0_21, %c0_22] : memref<32x16xbf16, #tpu.memory_space<vmem>>, vector<32x16xbf16>
    %cst_23 = arith.constant dense<0.000000e+00> : vector<16x16xf32>
    %35 = tpu.matmul %25, %34, %cst_23 {dimension_numbers = #tpu.dot_dimension_numbers<[1], [0], [0], [1], [0, 0, 1, 1], [], []>} : vector<16x32xbf16>, vector<32x16xbf16>, vector<16x16xf32> -> vector<16x16xf32>
    %c0_24 = arith.constant 0 : index
    %c0_25 = arith.constant 0 : index
    %36 = vector.load %arg7[%c0_24, %c0_25] : memref<32x256xbf16, #tpu.memory_space<vmem>>, vector<32x256xbf16>
    %cst_26 = arith.constant dense<0.000000e+00> : vector<16x256xf32>
    %37 = tpu.matmul %25, %36, %cst_26 {dimension_numbers = #tpu.dot_dimension_numbers<[1], [0], [0], [1], [0, 0, 1, 1], [], []>} : vector<16x32xbf16>, vector<32x256xbf16>, vector<16x256xf32> -> vector<16x256xf32>
    %c0_27 = arith.constant 0 : index
    %c0_28 = arith.constant 0 : index
    %38 = vector.load %arg11[%c0_27, %c0_28] : memref<16x16xf32, #tpu.memory_space<vmem>>, vector<16x16xf32>
    %c0_29 = arith.constant 0 : index
    %c0_30 = arith.constant 0 : index
    %39 = vector.load %arg12[%c0_29, %c0_30] : memref<16x16xf32, #tpu.memory_space<vmem>>, vector<16x16xf32>
    %40 = arith.mulf %31, %38 : vector<16x16xf32>
    %41 = arith.mulf %33, %39 : vector<16x16xf32>
    %42 = arith.addf %40, %41 : vector<16x16xf32>
    %43 = vector.extract_strided_slice %27 {offsets = [0, 0], sizes = [16, 16], strides = [1, 1]} : vector<16x64xf32> to vector<16x16xf32>
    %44 = vector.extract_strided_slice %29 {offsets = [0, 0], sizes = [16, 16], strides = [1, 1]} : vector<16x64xf32> to vector<16x16xf32>
    %45 = arith.mulf %43, %38 : vector<16x16xf32>
    %46 = arith.mulf %44, %39 : vector<16x16xf32>
    %47 = arith.addf %45, %46 : vector<16x16xf32>
    %48 = vector.extract_strided_slice %27 {offsets = [0, 16], sizes = [16, 16], strides = [1, 1]} : vector<16x64xf32> to vector<16x16xf32>
    %49 = vector.extract_strided_slice %29 {offsets = [0, 16], sizes = [16, 16], strides = [1, 1]} : vector<16x64xf32> to vector<16x16xf32>
    %50 = arith.mulf %48, %38 : vector<16x16xf32>
    %51 = arith.mulf %49, %39 : vector<16x16xf32>
    %52 = arith.addf %50, %51 : vector<16x16xf32>
    %53 = vector.extract_strided_slice %27 {offsets = [0, 32], sizes = [16, 16], strides = [1, 1]} : vector<16x64xf32> to vector<16x16xf32>
    %54 = vector.extract_strided_slice %29 {offsets = [0, 32], sizes = [16, 16], strides = [1, 1]} : vector<16x64xf32> to vector<16x16xf32>
    %55 = arith.mulf %53, %38 : vector<16x16xf32>
    %56 = arith.mulf %54, %39 : vector<16x16xf32>
    %57 = arith.addf %55, %56 : vector<16x16xf32>
    %58 = vector.extract_strided_slice %27 {offsets = [0, 48], sizes = [16, 16], strides = [1, 1]} : vector<16x64xf32> to vector<16x16xf32>
    %59 = vector.extract_strided_slice %29 {offsets = [0, 48], sizes = [16, 16], strides = [1, 1]} : vector<16x64xf32> to vector<16x16xf32>
    %60 = arith.mulf %58, %38 : vector<16x16xf32>
    %61 = arith.mulf %59, %39 : vector<16x16xf32>
    %62 = arith.addf %60, %61 : vector<16x16xf32>
    %63 = tpu.concatenate %47, %52, %57, %62 in 0 : vector<16x16xf32>, vector<16x16xf32>, vector<16x16xf32>, vector<16x16xf32> -> vector<64x16xf32>
    %64 = arith.truncf %63 : vector<64x16xf32> to vector<64x16xbf16>
    %65 = arith.truncf %42 : vector<16x16xf32> to vector<16x16xbf16>
    %cst_31 = arith.constant dense<0.000000e+00> : vector<64x16xf32>
    %66 = tpu.matmul %64, %65, %cst_31 {dimension_numbers = #tpu.dot_dimension_numbers<[1], [1], [0], [0], [0, 0, 1, 0], [], []>} : vector<64x16xbf16>, vector<16x16xbf16>, vector<64x16xf32> -> vector<64x16xf32>
    %67 = tpu.iota {dimensions = array<i32: 1>} : vector<64x16xi32>
    %c0_32 = arith.constant 0 : index
    %c0_33 = arith.constant 0 : index
    %68 = vector.load %arg13[%c0_32, %c0_33] : memref<64x1xi32, #tpu.memory_space<vmem>>, vector<64x1xi32>
    %69 = vector.broadcast %68 : vector<64x1xi32> to vector<64x16xi32>
    %70 = arith.cmpi sge, %67, %69 : vector<64x16xi32>
    %c0_34 = arith.constant 0 : index
    %c0_35 = arith.constant 0 : index
    %71 = vector.load %arg14[%c0_34, %c0_35] : memref<64x1xi32, #tpu.memory_space<vmem>>, vector<64x1xi32>
    %72 = vector.broadcast %71 : vector<64x1xi32> to vector<64x16xi32>
    %73 = arith.cmpi sle, %67, %72 : vector<64x16xi32>
    %74 = arith.andi %70, %73 : vector<64x16xi1>
    %cst_36 = arith.constant -1.000000e+30 : f32
    %75 = vector.broadcast %cst_36 : f32 to vector<64x16xf32>
    %76 = arith.select %74, %66, %75 : vector<64x16xi1>, vector<64x16xf32>
    %cst_37 = arith.constant dense<0xFF800000> : vector<64xf32>
    %77 = vector.multi_reduction <maximumf>, %76, %cst_37 [1] : vector<64x16xf32> to vector<64xf32>
    %78 = vector.shape_cast %77 : vector<64xf32> to vector<64x1xf32>
    %79 = vector.broadcast %78 : vector<64x1xf32> to vector<64x16xf32>
    %80 = arith.subf %76, %79 : vector<64x16xf32>
    %81 = math.exp %80 : vector<64x16xf32>
    %cst_38 = arith.constant dense<0.000000e+00> : vector<64xf32>
    %82 = vector.multi_reduction <add>, %81, %cst_38 [1] : vector<64x16xf32> to vector<64xf32>
    %83 = vector.shape_cast %82 : vector<64xf32> to vector<64x1xf32>
    %84 = tpu.reciprocal %83 {approx = true} : vector<64x1xf32> -> vector<64x1xf32>
    %85 = vector.broadcast %84 : vector<64x1xf32> to vector<64x16xf32>
    %86 = arith.mulf %81, %85 : vector<64x16xf32>
    %87 = arith.truncf %86 : vector<64x16xf32> to vector<64x16xbf16>
    %88 = arith.truncf %35 : vector<16x16xf32> to vector<16x16xbf16>
    %cst_39 = arith.constant dense<0.000000e+00> : vector<64x16xf32>
    %89 = tpu.matmul %87, %88, %cst_39 {dimension_numbers = #tpu.dot_dimension_numbers<[1], [0], [0], [1], [0, 0, 1, 1], [], []>} : vector<64x16xbf16>, vector<16x16xbf16>, vector<64x16xf32> -> vector<64x16xf32>
    %90 = vector.extract_strided_slice %89 {offsets = [0, 0], sizes = [16, 16], strides = [1, 1]} : vector<64x16xf32> to vector<16x16xf32>
    %91 = vector.extract_strided_slice %89 {offsets = [16, 0], sizes = [16, 16], strides = [1, 1]} : vector<64x16xf32> to vector<16x16xf32>
    %92 = vector.extract_strided_slice %89 {offsets = [32, 0], sizes = [16, 16], strides = [1, 1]} : vector<64x16xf32> to vector<16x16xf32>
    %93 = vector.extract_strided_slice %89 {offsets = [48, 0], sizes = [16, 16], strides = [1, 1]} : vector<64x16xf32> to vector<16x16xf32>
    %94 = tpu.concatenate %90, %91, %92, %93 in 1 : vector<16x16xf32>, vector<16x16xf32>, vector<16x16xf32>, vector<16x16xf32> -> vector<16x64xf32>
    %95 = vector.extract_strided_slice %37 {offsets = [0, 0], sizes = [16, 128], strides = [1, 1]} : vector<16x256xf32> to vector<16x128xf32>
    %96 = vector.extract_strided_slice %37 {offsets = [0, 128], sizes = [16, 128], strides = [1, 1]} : vector<16x256xf32> to vector<16x128xf32>
    %97 = arith.negf %96 : vector<16x128xf32>
    %98 = math.exp %97 : vector<16x128xf32>
    %cst_40 = arith.constant 1.000000e+00 : f32
    %99 = vector.broadcast %cst_40 : f32 to vector<16x128xf32>
    %100 = arith.addf %99, %98 : vector<16x128xf32>
    %101 = arith.divf %99, %100 : vector<16x128xf32>
    %102 = arith.mulf %96, %101 : vector<16x128xf32>
    %103 = arith.mulf %102, %95 : vector<16x128xf32>
    %104 = tpu.concatenate %103, %94 in 1 : vector<16x128xf32>, vector<16x64xf32> -> vector<16x192xf32>
    %105 = arith.truncf %104 : vector<16x192xf32> to vector<16x192xbf16>
    %c0_41 = arith.constant 0 : index
    %c0_42 = arith.constant 0 : index
    %106 = vector.load %arg8[%c0_41, %c0_42] : memref<192x32xbf16, #tpu.memory_space<vmem>>, vector<192x32xbf16>
    %cst_43 = arith.constant dense<0.000000e+00> : vector<16x32xf32>
    %107 = tpu.matmul %105, %106, %cst_43 {dimension_numbers = #tpu.dot_dimension_numbers<[1], [0], [0], [1], [0, 0, 1, 1], [], []>} : vector<16x192xbf16>, vector<192x32xbf16>, vector<16x32xf32> -> vector<16x32xf32>
    %c0_44 = arith.constant 0 : index
    %c0_45 = arith.constant 0 : index
    %108 = vector.load %arg15[%c0_44, %c0_45] : memref<16x32xf32, #tpu.memory_space<vmem>>, vector<16x32xf32>
    tpu.vector_store %arg15[%c0_44, %c0_45], %107 {strides = array<i32>} : memref<16x32xf32, #tpu.memory_space<vmem>>, vector<16x32xf32>,
    return
  }
  func.func @transform_0(%arg0: i32) -> (i32, i32) {
    %c0_i32 = arith.constant 0 : i32
    %c0_i32_0 = arith.constant 0 : i32
    return %arg0, %c0_i32 : i32, i32
  }
  func.func @transform_1(%arg0: i32) -> (i32, i32) {
    %c0_i32 = arith.constant 0 : i32
    %c0_i32_0 = arith.constant 0 : i32
    %c0_i32_1 = arith.constant 0 : i32
    return %c0_i32, %c0_i32_0 : i32, i32
  }
  func.func @transform_2(%arg0: i32) -> (i32, i32) {
    %c0_i32 = arith.constant 0 : i32
    %c0_i32_0 = arith.constant 0 : i32
    %c0_i32_1 = arith.constant 0 : i32
    return %c0_i32, %c0_i32_0 : i32, i32
  }
  func.func @transform_3(%arg0: i32) -> (i32, i32) {
    %c0_i32 = arith.constant 0 : i32
    %c0_i32_0 = arith.constant 0 : i32
    %c0_i32_1 = arith.constant 0 : i32
    return %c0_i32, %c0_i32_0 : i32, i32
  }
  func.func @transform_4(%arg0: i32) -> (i32, i32) {
    %c0_i32 = arith.constant 0 : i32
    %c0_i32_0 = arith.constant 0 : i32
    %c0_i32_1 = arith.constant 0 : i32
    return %c0_i32, %c0_i32_0 : i32, i32
  }
  func.func @transform_5(%arg0: i32) -> (i32, i32) {
    %c0_i32 = arith.constant 0 : i32
    %c0_i32_0 = arith.constant 0 : i32
    %c0_i32_1 = arith.constant 0 : i32
    return %c0_i32, %c0_i32_0 : i32, i32
  }
  func.func @transform_6(%arg0: i32) -> (i32, i32) {
    %c0_i32 = arith.constant 0 : i32
    %c0_i32_0 = arith.constant 0 : i32
    %c0_i32_1 = arith.constant 0 : i32
    return %c0_i32, %c0_i32_0 : i32, i32
  }
  func.func @transform_7(%arg0: i32) -> (i32, i32) {
    %c0_i32 = arith.constant 0 : i32
    %c0_i32_0 = arith.constant 0 : i32
    %c0_i32_1 = arith.constant 0 : i32
    return %c0_i32, %c0_i32_0 : i32, i32
  }
  func.func @transform_8(%arg0: i32) -> (i32, i32) {
    %c0_i32 = arith.constant 0 : i32
    %c0_i32_0 = arith.constant 0 : i32
    %c0_i32_1 = arith.constant 0 : i32
    return %c0_i32, %c0_i32_0 : i32, i32
  }
  func.func @transform_9(%arg0: i32) -> (i32, i32) {
    %c0_i32 = arith.constant 0 : i32
    %c0_i32_0 = arith.constant 0 : i32
    %c0_i32_1 = arith.constant 0 : i32
    return %c0_i32, %c0_i32_0 : i32, i32
  }
  func.func @transform_10(%arg0: i32) -> (i32, i32) {
    %c0_i32 = arith.constant 0 : i32
    %c0_i32_0 = arith.constant 0 : i32
    %c0_i32_1 = arith.constant 0 : i32
    return %c0_i32, %c0_i32_0 : i32, i32
  }
  func.func @transform_11(%arg0: i32) -> (i32, i32) {
    %c0_i32 = arith.constant 0 : i32
    %c0_i32_0 = arith.constant 0 : i32
    %c0_i32_1 = arith.constant 0 : i32
    return %c0_i32, %c0_i32_0 : i32, i32
  }
  func.func @transform_12(%arg0: i32) -> (i32, i32) {
    %c0_i32 = arith.constant 0 : i32
    %c0_i32_0 = arith.constant 0 : i32
    %c0_i32_1 = arith.constant 0 : i32
    return %c0_i32, %c0_i32_0 : i32, i32
  }
  func.func @transform_13(%arg0: i32) -> (i32, i32) {
    %c0_i32 = arith.constant 0 : i32
    %c0_i32_0 = arith.constant 0 : i32
    %c0_i32_1 = arith.constant 0 : i32
    return %c0_i32, %c0_i32_0 : i32, i32
  }
  func.func @transform_14(%arg0: i32) -> (i32, i32) {
    %c0_i32 = arith.constant 0 : i32
    %c0_i32_0 = arith.constant 0 : i32
    return %arg0, %c0_i32 : i32, i32
  }
}

</mosaic_0001>

<llo_original>
// kernel: tpu_custom_call.1
$region0: #{tpu_custom_call.1}
  #allocation0 [shape = 'u32[]', space=smem, size = 0x4, offset = 0x4, fixed_abs, tag = 'smem constant byte address 0x4 - core index']
  #allocation1 [shape = 'u32[144,128]{1,0:T(1,128)}', space=vmem, size = 0x12000, scoped, tag = 'internal scratch']
  %s0 = inlined_call_operand.vmem [shape: f32[16,32], index: 0, kind: input, shape index: {}]
  %s1 = inlined_call_operand.vmem [shape: bf16[32,64], index: 1, kind: input, shape index: {}]
  %s2 = inlined_call_operand.vmem [shape: bf16[32,64], index: 2, kind: input, shape index: {}]
  %s3 = inlined_call_operand.vmem [shape: bf16[32,16], index: 3, kind: input, shape index: {}]
  %s4 = inlined_call_operand.vmem [shape: bf16[32,16], index: 4, kind: input, shape index: {}]
  %s5 = inlined_call_operand.vmem [shape: bf16[32,16], index: 5, kind: input, shape index: {}]
  %s6 = inlined_call_operand.vmem [shape: bf16[32,256], index: 6, kind: input, shape index: {}]
  %s7 = inlined_call_operand.vmem [shape: bf16[192,32], index: 7, kind: input, shape index: {}]
  %s8 = inlined_call_operand.vmem [shape: f32[1,32], index: 8, kind: input, shape index: {}]
  %s9 = inlined_call_operand.vmem [shape: f32[1,32], index: 9, kind: input, shape index: {}]
  %s10 = inlined_call_operand.vmem [shape: f32[16,16], index: 10, kind: input, shape index: {}]
  %s11 = inlined_call_operand.vmem [shape: f32[16,16], index: 11, kind: input, shape index: {}]
  %s12 = inlined_call_operand.vmem [shape: s32[64,1], index: 12, kind: input, shape index: {}]
  %s13 = inlined_call_operand.vmem [shape: s32[64,1], index: 13, kind: input, shape index: {}]
  %s14 = inlined_call_operand.hbm [shape: f32[16,32], index: 14, kind: output, shape index: {}]
  %s15 = sld [smem:[#allocation0]]
  $region66: #{tpu_custom_call.1} parent=0
    _
  %s17 = ssub.s32 1, %s15
  %s18 = scalar_select 0, %s17, %s15
  $region1: #{tpu_custom_call.1} parent=0
    #allocation2 [shape = 'u8[8192]{0}', space=vmem, size = 0x2000, scoped, tag = 'output window, operand 0, single buffered']
    #allocation3 [shape = 's32[1]{0}', space=sflag, size = 0x4, scoped, tag = 'scoped memory for tpu_custom_call.1']
    %19 = vsyncpa [#allocation3], 0
    // Predicated region
    $region2: #{tpu_custom_call.1} parent=1 // pred_check
      _
    $region3: #{tpu_custom_call.1} parent=1 // pred_check_branch
      %21 = sbr.rel (0) target = $region5
    $region4: #{tpu_custom_call.1} parent=1 // pred_region
      _
    $region5: #{tpu_custom_call.1} parent=1 // pred_fallthru
      _
    // Predicated region
    $region6: #{tpu_custom_call.1} parent=1 // pred_check
      _
    $region7: #{tpu_custom_call.1} parent=1 // pred_check_branch
      %23 = sbr.rel (0) target = $region9
    $region8: #{tpu_custom_call.1} parent=1 // pred_region
      _
    $region9: #{tpu_custom_call.1} parent=1 // pred_fallthru
      _
    // Predicated region
    $region10: #{tpu_custom_call.1} parent=1 // pred_check
      _
    $region11: #{tpu_custom_call.1} parent=1 // pred_check_branch
      %25 = sbr.rel (0) target = $region13
    $region12: #{tpu_custom_call.1} parent=1 // pred_region
      _
    $region13: #{tpu_custom_call.1} parent=1 // pred_fallthru
      _
    // Predicated region
    $region14: #{tpu_custom_call.1} parent=1 // pred_check
      _
    $region15: #{tpu_custom_call.1} parent=1 // pred_check_branch
      %27 = sbr.rel (0) target = $region17
    $region16: #{tpu_custom_call.1} parent=1 // pred_region
      _
    $region17: #{tpu_custom_call.1} parent=1 // pred_fallthru
      _
    // Predicated region
    $region18: #{tpu_custom_call.1} parent=1 // pred_check
      _
    $region19: #{tpu_custom_call.1} parent=1 // pred_check_branch
      %29 = sbr.rel (0) target = $region21
    $region20: #{tpu_custom_call.1} parent=1 // pred_region
      _
    $region21: #{tpu_custom_call.1} parent=1 // pred_fallthru
      _
    // Predicated region
    $region22: #{tpu_custom_call.1} parent=1 // pred_check
      _
    $region23: #{tpu_custom_call.1} parent=1 // pred_check_branch
      %31 = sbr.rel (0) target = $region25
    $region24: #{tpu_custom_call.1} parent=1 // pred_region
      _
    $region25: #{tpu_custom_call.1} parent=1 // pred_fallthru
      _
    // Predicated region
    $region26: #{tpu_custom_call.1} parent=1 // pred_check
      _
    $region27: #{tpu_custom_call.1} parent=1 // pred_check_branch
      %33 = sbr.rel (0) target = $region29
    $region28: #{tpu_custom_call.1} parent=1 // pred_region
      _
    $region29: #{tpu_custom_call.1} parent=1 // pred_fallthru
      _
    // Predicated region
    $region30: #{tpu_custom_call.1} parent=1 // pred_check
      _
    $region31: #{tpu_custom_call.1} parent=1 // pred_check_branch
      %35 = sbr.rel (0) target = $region33
    $region32: #{tpu_custom_call.1} parent=1 // pred_region
      _
    $region33: #{tpu_custom_call.1} parent=1 // pred_fallthru
      _
    // Predicated region
    $region34: #{tpu_custom_call.1} parent=1 // pred_check
      _
    $region35: #{tpu_custom_call.1} parent=1 // pred_check_branch
      %37 = sbr.rel (0) target = $region37
    $region36: #{tpu_custom_call.1} parent=1 // pred_region
      _
    $region37: #{tpu_custom_call.1} parent=1 // pred_fallthru
      _
    // Predicated region
    $region38: #{tpu_custom_call.1} parent=1 // pred_check
      _
    $region39: #{tpu_custom_call.1} parent=1 // pred_check_branch
      %39 = sbr.rel (0) target = $region41
    $region40: #{tpu_custom_call.1} parent=1 // pred_region
      _
    $region41: #{tpu_custom_call.1} parent=1 // pred_fallthru
      _
    // Predicated region
    $region42: #{tpu_custom_call.1} parent=1 // pred_check
      _
    $region43: #{tpu_custom_call.1} parent=1 // pred_check_branch
      %41 = sbr.rel (0) target = $region45
    $region44: #{tpu_custom_call.1} parent=1 // pred_region
      _
    $region45: #{tpu_custom_call.1} parent=1 // pred_fallthru
      _
    // Predicated region
    $region46: #{tpu_custom_call.1} parent=1 // pred_check
      _
    $region47: #{tpu_custom_call.1} parent=1 // pred_check_branch
      %43 = sbr.rel (0) target = $region49
    $region48: #{tpu_custom_call.1} parent=1 // pred_region
      _
    $region49: #{tpu_custom_call.1} parent=1 // pred_fallthru
      _
    // Predicated region
    $region50: #{tpu_custom_call.1} parent=1 // pred_check
      _
    $region51: #{tpu_custom_call.1} parent=1 // pred_check_branch
      %45 = sbr.rel (0) target = $region53
    $region52: #{tpu_custom_call.1} parent=1 // pred_region
      _
    $region53: #{tpu_custom_call.1} parent=1 // pred_fallthru
      _
    // Predicated region
    $region54: #{tpu_custom_call.1} parent=1 // pred_check
      _
    $region55: #{tpu_custom_call.1} parent=1 // pred_check_branch
      %47 = sbr.rel (0) target = $region57
    $region56: #{tpu_custom_call.1} parent=1 // pred_region
      _
    $region57: #{tpu_custom_call.1} parent=1 // pred_fallthru
      _
    %v49 = vld [vmem:[%s0] sm:$0xff]
    %v50 = vld [vmem:[%s0 + $0x8] sm:$0xff]
    %vm51 = vcmask 261120
    %v52 = vsel %vm51, %v49, 0.0
    %53 = vadd.xlane.f32.xlu0 %v52
    %v54 = vpop.xlane.xlu0 %53
    %v55 = vsel %vm51, %v50, 0.0
    %56 = vadd.xlane.f32.xlu0 %v55
    %v57 = vpop.xlane.xlu0 %56
    %v58 = vrcp.pop 32.0
    %v59 = vmul.f32 %v54, %v58
    %v60 = vmul.f32 %v57, %v58
    %v61 = vsub.f32 %v49, %v59
    %v62 = vsub.f32 %v50, %v60
    %v63 = vmul.f32 %v61, %v61
    %v64 = vmul.f32 %v62, %v62
    %v65 = vsel %vm51, %v63, 0.0
    %66 = vadd.xlane.f32.xlu0 %v65
    %v67 = vpop.xlane.xlu0 %66
    %v68 = vsel %vm51, %v64, 0.0
    %69 = vadd.xlane.f32.xlu0 %v68
    %v70 = vpop.xlane.xlu0 %69
    %v71 = vmul.f32 %v67, %v58
    %v72 = vmul.f32 %v70, %v58
    %v73 = vadd.f32 %v71, 1e-05
    %v74 = vadd.f32 %v72, 1e-05
    %v75 = vrsqrt.pop %v73
    %v76 = vrsqrt.pop %v74
    %v77 = vmul.f32 %v61, %v75
    %v78 = vmul.f32 %v62, %v76
    %v79 = vld [vmem:[%s8] sm:$0x1]
    %v81 = vlaneseq
    %v82 = vshrl.u32 %v81, 7
    %v83 = vsub.s32 0, %v82
    %v84 = vrot.slane %v79, %v83
    %v86 = vmul.f32 %v77, %v84
    %v87 = vmul.f32 %v78, %v84
    %v88 = vld [vmem:[%s9] sm:$0x1]
    %v90 = vlaneseq
    %v91 = vshrl.u32 %v90, 7
    %v92 = vsub.s32 0, %v91
    %v93 = vrot.slane %v88, %v92
    %v95 = vadd.f32 %v86, %v93
    %v96 = vadd.f32 %v87, %v93
    %v97 = vpack.c.bf16 %v96, %v95
    %v98 = vld [vmem:[%s1] sm:$0xf]
    %v99 = vld [vmem:[%s1 + $0x4] sm:$0xf]
    %v100 = vld [vmem:[%s1 + $0x8] sm:$0xf]
    %v101 = vld [vmem:[%s1 + $0xc] sm:$0xf]
    %v106 = vunpack.c.l.b16 %v98
    %v107 = vunpack.c.l.b16 %v99
    %v108 = vunpack.c.l.b16 %v100
    %v109 = vunpack.c.l.b16 %v101
    %v110 = vpack.c.b16 %v107, %v106
    %v111 = vpack.c.b16 %v109, %v108
    %v115 = vsel %vm51, %v97, 0
    %117 = vmatprep.subr.bf16.mxu0 0
    %118 = vmatpush1.bf16.msra.mxu0 %v110
    %119 = vmatprep.subr.bf16.mxu0 0
    %120 = vmatpush1.bf16.msra.mxu0 %v111
    %121 = vmatprep.subr.bf16.mxu0 0
    %122 = vmatpush1.bf16.msra.mxu0 0
    %123 = vmatprep.subr.bf16.mxu0 0
    %124 = vmatpush1.bf16.msra.mxu0 0
    %125 = vmatprep.subr.bf16.mxu0 0
    %126 = vmatpush1.bf16.msra.mxu0 0
    %127 = vmatprep.subr.bf16.mxu0 0
    %128 = vmatpush1.bf16.msra.mxu0 0
    %129 = vmatprep.subr.bf16.mxu0 0
    %130 = vmatpush1.bf16.msra.mxu0 0
    %131 = vmatprep.subr.bf16.mxu0 0
    %132 = vmatpush1.bf16.msra.mxu0 0
    %133 = vmatprep.subr.bf16.mxu0 0
    %134 = vmatpush1.bf16.msra.mxu0 0
    %135 = vmatprep.subr.bf16.mxu0 0
    %136 = vmatpush1.bf16.msra.mxu0 0
    %137 = vmatprep.subr.bf16.mxu0 0
    %138 = vmatpush1.bf16.msra.mxu0 0
    %139 = vmatprep.subr.bf16.mxu0 0
    %140 = vmatpush1.bf16.msra.mxu0 0
    %141 = vmatprep.subr.bf16.mxu0 0
    %142 = vmatpush1.bf16.msra.mxu0 0
    %143 = vmatprep.subr.bf16.mxu0 0
    %144 = vmatpush1.bf16.msra.mxu0 0
    %145 = vmatprep.subr.bf16.mxu0 0
    %146 = vmatpush1.bf16.msra.mxu0 0
    %147 = vmatprep.subr.bf16.mxu0 0
    %148 = vmatpush1.bf16.msra.mxu0 0
    %149 = vmatprep.mubr.bf16.mxu0 0
    %150 = vmatmul.mubr.bf16.gmra.mrb[0].mxu0 %v115
    %v151 = vpop.f32.mrb[0].mxu0
    %v152 = vadd.f32 0.0, %v151
    %v153 = vpop.f32.mrb[0].mxu0
    %v154 = vpop.f32.mrb[0].mxu0
    %v155 = vadd.f32 0.0, %v154
    %v156 = vpop.f32.mrb[0].mxu0
    %157 = vdwg.mxu0
    %v158 = vld [vmem:[%s2] sm:$0xf]
    %v159 = vld [vmem:[%s2 + $0x4] sm:$0xf]
    %v160 = vld [vmem:[%s2 + $0x8] sm:$0xf]
    %v161 = vld [vmem:[%s2 + $0xc] sm:$0xf]
    %v166 = vunpack.c.l.b16 %v158
    %v167 = vunpack.c.l.b16 %v159
    %v168 = vunpack.c.l.b16 %v160
    %v169 = vunpack.c.l.b16 %v161
    %v170 = vpack.c.b16 %v167, %v166
    %v171 = vpack.c.b16 %v169, %v168
    %174 = vmatprep.subr.bf16.mxu0 0
    %175 = vmatpush1.bf16.msra.mxu0 %v170
    %176 = vmatprep.subr.bf16.mxu0 0
    %177 = vmatpush1.bf16.msra.mxu0 %v171
    %178 = vmatprep.subr.bf16.mxu0 0
    %179 = vmatpush1.bf16.msra.mxu0 0
    %180 = vmatprep.subr.bf16.mxu0 0
    %181 = vmatpush1.bf16.msra.mxu0 0
    %182 = vmatprep.subr.bf16.mxu0 0
    %183 = vmatpush1.bf16.msra.mxu0 0
    %184 = vmatprep.subr.bf16.mxu0 0
    %185 = vmatpush1.bf16.msra.mxu0 0
    %186 = vmatprep.subr.bf16.mxu0 0
    %187 = vmatpush1.bf16.msra.mxu0 0
    %188 = vmatprep.subr.bf16.mxu0 0
    %189 = vmatpush1.bf16.msra.mxu0 0
    %190 = vmatprep.subr.bf16.mxu0 0
    %191 = vmatpush1.bf16.msra.mxu0 0
    %192 = vmatprep.subr.bf16.mxu0 0
    %193 = vmatpush1.bf16.msra.mxu0 0
    %194 = vmatprep.subr.bf16.mxu0 0
    %195 = vmatpush1.bf16.msra.mxu0 0
    %196 = vmatprep.subr.bf16.mxu0 0
    %197 = vmatpush1.bf16.msra.mxu0 0
    %198 = vmatprep.subr.bf16.mxu0 0
    %199 = vmatpush1.bf16.msra.mxu0 0
    %200 = vmatprep.subr.bf16.mxu0 0
    %201 = vmatpush1.bf16.msra.mxu0 0
    %202 = vmatprep.subr.bf16.mxu0 0
    %203 = vmatpush1.bf16.msra.mxu0 0
    %204 = vmatprep.subr.bf16.mxu0 0
    %205 = vmatpush1.bf16.msra.mxu0 0
    %206 = vmatprep.mubr.bf16.mxu0 0
    %207 = vmatmul.mubr.bf16.gmra.mrb[0].mxu0 %v115
    %v208 = vpop.f32.mrb[0].mxu0
    %v209 = vadd.f32 0.0, %v208
    %v210 = vpop.f32.mrb[0].mxu0
    %v211 = vpop.f32.mrb[0].mxu0
    %v212 = vadd.f32 0.0, %v211
    %v213 = vpop.f32.mrb[0].mxu0
    %214 = vdwg.mxu0
    %v215 = vld [vmem:[%s3] sm:$0xf]
    %v216 = vld [vmem:[%s3 + $0x4] sm:$0xf]
    %v217 = vld [vmem:[%s3 + $0x8] sm:$0xf]
    %v218 = vld [vmem:[%s3 + $0xc] sm:$0xf]
    %v223 = vunpack.c.l.b16 %v215
    %v224 = vunpack.c.l.b16 %v216
    %v225 = vunpack.c.l.b16 %v217
    %v226 = vunpack.c.l.b16 %v218
    %v227 = vpack.c.b16 %v224, %v223
    %v228 = vpack.c.b16 %v226, %v225
    %231 = vmatprep.subr.bf16.mxu0 0
    %232 = vmatpush1.bf16.msra.mxu0 %v227
    %233 = vmatprep.subr.bf16.mxu0 0
    %234 = vmatpush1.bf16.msra.mxu0 %v228
    %235 = vmatprep.subr.bf16.mxu0 0
    %236 = vmatpush1.bf16.msra.mxu0 0
    %237 = vmatprep.subr.bf16.mxu0 0
    %238 = vmatpush1.bf16.msra.mxu0 0
    %239 = vmatprep.subr.bf16.mxu0 0
    %240 = vmatpush1.bf16.msra.mxu0 0
    %241 = vmatprep.subr.bf16.mxu0 0
    %242 = vmatpush1.bf16.msra.mxu0 0
    %243 = vmatprep.subr.bf16.mxu0 0
    %244 = vmatpush1.bf16.msra.mxu0 0
    %245 = vmatprep.subr.bf16.mxu0 0
    %246 = vmatpush1.bf16.msra.mxu0 0
    %247 = vmatprep.subr.bf16.mxu0 0
    %248 = vmatpush1.bf16.msra.mxu0 0
    %249 = vmatprep.subr.bf16.mxu0 0
    %250 = vmatpush1.bf16.msra.mxu0 0
    %251 = vmatprep.subr.bf16.mxu0 0
    %252 = vmatpush1.bf16.msra.mxu0 0
    %253 = vmatprep.subr.bf16.mxu0 0
    %254 = vmatpush1.bf16.msra.mxu0 0
    %255 = vmatprep.subr.bf16.mxu0 0
    %256 = vmatpush1.bf16.msra.mxu0 0
    %257 = vmatprep.subr.bf16.mxu0 0
    %258 = vmatpush1.bf16.msra.mxu0 0
    %259 = vmatprep.subr.bf16.mxu0 0
    %260 = vmatpush1.bf16.msra.mxu0 0
    %261 = vmatprep.subr.bf16.mxu0 0
    %262 = vmatpush1.bf16.msra.mxu0 0
    %263 = vmatprep.mubr.bf16.mxu0 0
    %264 = vmatmul.mubr.bf16.gmra.mrb[0].mxu0 %v115
    %v265 = vpop.f32.mrb[0].mxu0
    %v266 = vadd.f32 0.0, %v265
    %v267 = vpop.f32.mrb[0].mxu0
    %v268 = vpop.f32.mrb[0].mxu0
    %v269 = vadd.f32 0.0, %v268
    %v270 = vpop.f32.mrb[0].mxu0
    %271 = vdwg.mxu0
    %v272 = vld [vmem:[%s4] sm:$0xf]
    %v273 = vld [vmem:[%s4 + $0x4] sm:$0xf]
    %v274 = vld [vmem:[%s4 + $0x8] sm:$0xf]
    %v275 = vld [vmem:[%s4 + $0xc] sm:$0xf]
    %v280 = vunpack.c.l.b16 %v272
    %v281 = vunpack.c.l.b16 %v273
    %v282 = vunpack.c.l.b16 %v274
    %v283 = vunpack.c.l.b16 %v275
    %v284 = vpack.c.b16 %v281, %v280
    %v285 = vpack.c.b16 %v283, %v282
    %288 = vmatprep.subr.bf16.mxu0 0
    %289 = vmatpush1.bf16.msra.mxu0 %v284
    %290 = vmatprep.subr.bf16.mxu0 0
    %291 = vmatpush1.bf16.msra.mxu0 %v285
    %292 = vmatprep.subr.bf16.mxu0 0
    %293 = vmatpush1.bf16.msra.mxu0 0
    %294 = vmatprep.subr.bf16.mxu0 0
    %295 = vmatpush1.bf16.msra.mxu0 0
    %296 = vmatprep.subr.bf16.mxu0 0
    %297 = vmatpush1.bf16.msra.mxu0 0
    %298 = vmatprep.subr.bf16.mxu0 0
    %299 = vmatpush1.bf16.msra.mxu0 0
    %300 = vmatprep.subr.bf16.mxu0 0
    %301 = vmatpush1.bf16.msra.mxu0 0
    %302 = vmatprep.subr.bf16.mxu0 0
    %303 = vmatpush1.bf16.msra.mxu0 0
    %304 = vmatprep.subr.bf16.mxu0 0
    %305 = vmatpush1.bf16.msra.mxu0 0
    %306 = vmatprep.subr.bf16.mxu0 0
    %307 = vmatpush1.bf16.msra.mxu0 0
    %308 = vmatprep.subr.bf16.mxu0 0
    %309 = vmatpush1.bf16.msra.mxu0 0
    %310 = vmatprep.subr.bf16.mxu0 0
    %311 = vmatpush1.bf16.msra.mxu0 0
    %312 = vmatprep.subr.bf16.mxu0 0
    %313 = vmatpush1.bf16.msra.mxu0 0
    %314 = vmatprep.subr.bf16.mxu0 0
    %315 = vmatpush1.bf16.msra.mxu0 0
    %316 = vmatprep.subr.bf16.mxu0 0
    %317 = vmatpush1.bf16.msra.mxu0 0
    %318 = vmatprep.subr.bf16.mxu0 0
    %319 = vmatpush1.bf16.msra.mxu0 0
    %320 = vmatprep.mubr.bf16.mxu0 0
    %321 = vmatmul.mubr.bf16.gmra.mrb[0].mxu0 %v115
    %v322 = vpop.f32.mrb[0].mxu0
    %v323 = vadd.f32 0.0, %v322
    %v324 = vpop.f32.mrb[0].mxu0
    %v325 = vpop.f32.mrb[0].mxu0
    %v326 = vadd.f32 0.0, %v325
    %v327 = vpop.f32.mrb[0].mxu0
    %328 = vdwg.mxu0
    %v329 = vld [vmem:[%s5] sm:$0xf]
    %v330 = vld [vmem:[%s5 + $0x4] sm:$0xf]
    %v331 = vld [vmem:[%s5 + $0x8] sm:$0xf]
    %v332 = vld [vmem:[%s5 + $0xc] sm:$0xf]
    %v337 = vunpack.c.l.b16 %v329
    %v338 = vunpack.c.l.b16 %v330
    %v339 = vunpack.c.l.b16 %v331
    %v340 = vunpack.c.l.b16 %v332
    %v341 = vpack.c.b16 %v338, %v337
    %v342 = vpack.c.b16 %v340, %v339
    %345 = vmatprep.subr.bf16.mxu0 0
    %346 = vmatpush1.bf16.msra.mxu0 %v341
    %347 = vmatprep.subr.bf16.mxu0 0
    %348 = vmatpush1.bf16.msra.mxu0 %v342
    %349 = vmatprep.subr.bf16.mxu0 0
    %350 = vmatpush1.bf16.msra.mxu0 0
    %351 = vmatprep.subr.bf16.mxu0 0
    %352 = vmatpush1.bf16.msra.mxu0 0
    %353 = vmatprep.subr.bf16.mxu0 0
    %354 = vmatpush1.bf16.msra.mxu0 0
    %355 = vmatprep.subr.bf16.mxu0 0
    %356 = vmatpush1.bf16.msra.mxu0 0
    %357 = vmatprep.subr.bf16.mxu0 0
    %358 = vmatpush1.bf16.msra.mxu0 0
    %359 = vmatprep.subr.bf16.mxu0 0
    %360 = vmatpush1.bf16.msra.mxu0 0
    %361 = vmatprep.subr.bf16.mxu0 0
    %362 = vmatpush1.bf16.msra.mxu0 0
    %363 = vmatprep.subr.bf16.mxu0 0
    %364 = vmatpush1.bf16.msra.mxu0 0
    %365 = vmatprep.subr.bf16.mxu0 0
    %366 = vmatpush1.bf16.msra.mxu0 0
    %367 = vmatprep.subr.bf16.mxu0 0
    %368 = vmatpush1.bf16.msra.mxu0 0
    %369 = vmatprep.subr.bf16.mxu0 0
    %370 = vmatpush1.bf16.msra.mxu0 0
    %371 = vmatprep.subr.bf16.mxu0 0
    %372 = vmatpush1.bf16.msra.mxu0 0
    %373 = vmatprep.subr.bf16.mxu0 0
    %374 = vmatpush1.bf16.msra.mxu0 0
    %375 = vmatprep.subr.bf16.mxu0 0
    %376 = vmatpush1.bf16.msra.mxu0 0
    %377 = vmatprep.mubr.bf16.mxu0 0
    %378 = vmatmul.mubr.bf16.gmra.mrb[0].mxu0 %v115
    %v379 = vpop.f32.mrb[0].mxu0
    %v380 = vadd.f32 0.0, %v379
    %v381 = vpop.f32.mrb[0].mxu0
    %v382 = vpop.f32.mrb[0].mxu0
    %v383 = vadd.f32 0.0, %v382
    %v384 = vpop.f32.mrb[0].mxu0
    %385 = vdwg.mxu0
    %v386 = vld [vmem:[%s6] sm:$0xff]
    %v387 = vld [vmem:[%s6 + $0x8] sm:$0xff]
    %v388 = vld [vmem:[%s6 + $0x10] sm:$0xff]
    %v389 = vld [vmem:[%s6 + $0x18] sm:$0xff]
    %v394 = vunpack.c.l.b16 %v386
    %v395 = vunpack.c.h.b16 %v386
    %v396 = vunpack.c.l.b16 %v387
    %v397 = vunpack.c.h.b16 %v387
    %v398 = vunpack.c.l.b16 %v388
    %v399 = vunpack.c.h.b16 %v388
    %v400 = vunpack.c.l.b16 %v389
    %v401 = vunpack.c.h.b16 %v389
    %v402 = vpack.c.b16 %v396, %v394
    %v403 = vpack.c.b16 %v397, %v395
    %v404 = vpack.c.b16 %v400, %v398
    %v405 = vpack.c.b16 %v401, %v399
    %410 = vmatprep.subr.bf16.mxu0 %v403
    %411 = vmatpush1.bf16.msra.mxu0 %v402
    %412 = vmatprep.subr.bf16.mxu0 %v405
    %413 = vmatpush1.bf16.msra.mxu0 %v404
    %414 = vmatprep.subr.bf16.mxu0 0
    %415 = vmatpush1.bf16.msra.mxu0 0
    %416 = vmatprep.subr.bf16.mxu0 0
    %417 = vmatpush1.bf16.msra.mxu0 0
    %418 = vmatprep.subr.bf16.mxu0 0
    %419 = vmatpush1.bf16.msra.mxu0 0
    %420 = vmatprep.subr.bf16.mxu0 0
    %421 = vmatpush1.bf16.msra.mxu0 0
    %422 = vmatprep.subr.bf16.mxu0 0
    %423 = vmatpush1.bf16.msra.mxu0 0
    %424 = vmatprep.subr.bf16.mxu0 0
    %425 = vmatpush1.bf16.msra.mxu0 0
    %426 = vmatprep.subr.bf16.mxu0 0
    %427 = vmatpush1.bf16.msra.mxu0 0
    %428 = vmatprep.subr.bf16.mxu0 0
    %429 = vmatpush1.bf16.msra.mxu0 0
    %430 = vmatprep.subr.bf16.mxu0 0
    %431 = vmatpush1.bf16.msra.mxu0 0
    %432 = vmatprep.subr.bf16.mxu0 0
    %433 = vmatpush1.bf16.msra.mxu0 0
    %434 = vmatprep.subr.bf16.mxu0 0
    %435 = vmatpush1.bf16.msra.mxu0 0
    %436 = vmatprep.subr.bf16.mxu0 0
    %437 = vmatpush1.bf16.msra.mxu0 0
    %438 = vmatprep.subr.bf16.mxu0 0
    %439 = vmatpush1.bf16.msra.mxu0 0
    %440 = vmatprep.subr.bf16.mxu0 0
    %441 = vmatpush1.bf16.msra.mxu0 0
    %442 = vmatprep.mubr.bf16.mxu0 0
    %443 = vmatmul.mubr.bf16.gmra.mrb[0].mxu0 %v115
    %v444 = vpop.f32.mrb[0].mxu0
    %v445 = vadd.f32 0.0, %v444
    %v446 = vpop.f32.mrb[0].mxu0
    %v447 = vadd.f32 0.0, %v446
    %v448 = vpop.f32.mrb[0].mxu0
    %v449 = vadd.f32 0.0, %v448
    %v450 = vpop.f32.mrb[0].mxu0
    %v451 = vadd.f32 0.0, %v450
    %452 = vdwg.mxu0
    %v453 = vld [vmem:[%s10] sm:$0xff]
    %v454 = vld [vmem:[%s10 + $0x8] sm:$0xff]
    %v455 = vld [vmem:[%s11] sm:$0xff]
    %v456 = vld [vmem:[%s11 + $0x8] sm:$0xff]
    %v457 = vmul.f32 %v266, %v453
    %v458 = vmul.f32 %v269, %v454
    %v459 = vmul.f32 %v323, %v455
    %v460 = vmul.f32 %v326, %v456
    %v461 = vadd.f32 %v457, %v459
    %v462 = vadd.f32 %v458, %v460
    %v463 = vmul.f32 %v152, %v453
    %v464 = vmul.f32 %v155, %v454
    %v465 = vmul.f32 %v209, %v455
    %v466 = vmul.f32 %v212, %v456
    %v467 = vadd.f32 %v463, %v465
    %v468 = vadd.f32 %v464, %v466
    %471 = vrot.lane.b32.xlu0 %v453, 16
    %v472 = vpop.permute.xlu0 %471
    %473 = vrot.lane.b32.xlu0 %v454, 16
    %v474 = vpop.permute.xlu0 %473
    %v477 = vmul.f32 %v152, %v472
    %v478 = vmul.f32 %v155, %v474
    %481 = vrot.lane.b32.xlu0 %v455, 16
    %v482 = vpop.permute.xlu0 %481
    %483 = vrot.lane.b32.xlu0 %v456, 16
    %v484 = vpop.permute.xlu0 %483
    %v487 = vmul.f32 %v209, %v482
    %v488 = vmul.f32 %v212, %v484
    %v489 = vadd.f32 %v477, %v487
    %v490 = vadd.f32 %v478, %v488
    %491 = vrot.lane.b32.xlu0 %v453, 32
    %v492 = vpop.permute.xlu0 %491
    %493 = vrot.lane.b32.xlu0 %v454, 32
    %v494 = vpop.permute.xlu0 %493
    %v497 = vmul.f32 %v152, %v492
    %v498 = vmul.f32 %v155, %v494
    %499 = vrot.lane.b32.xlu0 %v455, 32
    %v500 = vpop.permute.xlu0 %499
    %501 = vrot.lane.b32.xlu0 %v456, 32
    %v502 = vpop.permute.xlu0 %501
    %v505 = vmul.f32 %v209, %v500
    %v506 = vmul.f32 %v212, %v502
    %v507 = vadd.f32 %v497, %v505
    %v508 = vadd.f32 %v498, %v506
    %509 = vrot.lane.b32.xlu0 %v453, 48
    %v510 = vpop.permute.xlu0 %509
    %511 = vrot.lane.b32.xlu0 %v454, 48
    %v512 = vpop.permute.xlu0 %511
    %v515 = vmul.f32 %v152, %v510
    %v516 = vmul.f32 %v155, %v512
    %517 = vrot.lane.b32.xlu0 %v455, 48
    %v518 = vpop.permute.xlu0 %517
    %519 = vrot.lane.b32.xlu0 %v456, 48
    %v520 = vpop.permute.xlu0 %519
    %v523 = vmul.f32 %v209, %v518
    %v524 = vmul.f32 %v212, %v520
    %v525 = vadd.f32 %v515, %v523
    %v526 = vadd.f32 %v516, %v524
    %529 = vrot.lane.b32.xlu0 %v489, 112
    %v530 = vpop.permute.xlu0 %529
    %531 = vrot.lane.b32.xlu0 %v490, 112
    %v532 = vpop.permute.xlu0 %531
    %537 = vrot.lane.b32.xlu0 %v507, 96
    %v538 = vpop.permute.xlu0 %537
    %539 = vrot.lane.b32.xlu0 %v508, 96
    %v540 = vpop.permute.xlu0 %539
    %545 = vrot.lane.b32.xlu0 %v525, 80
    %v546 = vpop.permute.xlu0 %545
    %547 = vrot.lane.b32.xlu0 %v526, 80
    %v548 = vpop.permute.xlu0 %547
    %v551 = vpack.c.bf16 %v468, %v467
    %v552 = vpack.c.bf16 %v532, %v530
    %v553 = vpack.c.bf16 %v540, %v538
    %v554 = vpack.c.bf16 %v548, %v546
    %v555 = vpack.c.bf16 %v462, %v461
    %vm556 = vcmask 130048
    %v558 = vsel %vm556, %v551, 0
    %v561 = vsel %vm556, %v552, 0
    %v564 = vsel %vm556, %v553, 0
    %v567 = vsel %vm556, %v554, 0
    %v570 = vsel %vm556, %v555, 0
    %572 = vmatprep.subr.bf16.mxu0 0
    %573 = vmatpush1.bf16.xpose.msra.mxu0 %v570
    %574 = vmatprep.subr.bf16.mxu0 0
    %575 = vmatpush1.bf16.xpose.msra.mxu0 0
    %576 = vmatprep.subr.bf16.mxu0 0
    %577 = vmatpush1.bf16.xpose.msra.mxu0 0
    %578 = vmatprep.subr.bf16.mxu0 0
    %579 = vmatpush1.bf16.xpose.msra.mxu0 0
    %580 = vmatprep.subr.bf16.mxu0 0
    %581 = vmatpush1.bf16.xpose.msra.mxu0 0
    %582 = vmatprep.subr.bf16.mxu0 0
    %583 = vmatpush1.bf16.xpose.msra.mxu0 0
    %584 = vmatprep.subr.bf16.mxu0 0
    %585 = vmatpush1.bf16.xpose.msra.mxu0 0
    %586 = vmatprep.subr.bf16.mxu0 0
    %587 = vmatpush1.bf16.xpose.msra.mxu0 0
    %588 = vmatprep.subr.bf16.mxu0 0
    %589 = vmatpush1.bf16.xpose.msra.mxu0 0
    %590 = vmatprep.subr.bf16.mxu0 0
    %591 = vmatpush1.bf16.xpose.msra.mxu0 0
    %592 = vmatprep.subr.bf16.mxu0 0
    %593 = vmatpush1.bf16.xpose.msra.mxu0 0
    %594 = vmatprep.subr.bf16.mxu0 0
    %595 = vmatpush1.bf16.xpose.msra.mxu0 0
    %596 = vmatprep.subr.bf16.mxu0 0
    %597 = vmatpush1.bf16.xpose.msra.mxu0 0
    %598 = vmatprep.subr.bf16.mxu0 0
    %599 = vmatpush1.bf16.xpose.msra.mxu0 0
    %600 = vmatprep.subr.bf16.mxu0 0
    %601 = vmatpush1.bf16.xpose.msra.mxu0 0
    %602 = vmatprep.subr.bf16.mxu0 0
    %603 = vmatpush1.bf16.xpose.msra.mxu0 0
    %604 = vmatprep.mubr.bf16.mxu0 0
    %605 = vmatmul.mubr.bf16.gmra.mrb[0].mxu0 %v558
    %v606 = vpop.f32.mrb[0].mxu0
    %v607 = vadd.f32 0.0, %v606
    %v608 = vpop.f32.mrb[0].mxu0
    %v609 = vpop.f32.mrb[0].mxu0
    %v610 = vadd.f32 0.0, %v609
    %v611 = vpop.f32.mrb[0].mxu0
    %612 = vmatprep.mubr.bf16.mxu0 0
    %613 = vmatmul.mubr.bf16.gmra.mrb[0].mxu0 %v561
    %v614 = vpop.f32.mrb[0].mxu0
    %v615 = vadd.f32 0.0, %v614
    %v616 = vpop.f32.mrb[0].mxu0
    %v617 = vpop.f32.mrb[0].mxu0
    %v618 = vadd.f32 0.0, %v617
    %v619 = vpop.f32.mrb[0].mxu0
    %620 = vmatprep.mubr.bf16.mxu0 0
    %621 = vmatmul.mubr.bf16.gmra.mrb[0].mxu0 %v564
    %v622 = vpop.f32.mrb[0].mxu0
    %v623 = vadd.f32 0.0, %v622
    %v624 = vpop.f32.mrb[0].mxu0
    %v625 = vpop.f32.mrb[0].mxu0
    %v626 = vadd.f32 0.0, %v625
    %v627 = vpop.f32.mrb[0].mxu0
    %628 = vmatprep.mubr.bf16.mxu0 0
    %629 = vmatmul.mubr.bf16.gmra.mrb[0].mxu0 %v567
    %v630 = vpop.f32.mrb[0].mxu0
    %v631 = vadd.f32 0.0, %v630
    %v632 = vpop.f32.mrb[0].mxu0
    %v633 = vpop.f32.mrb[0].mxu0
    %v634 = vadd.f32 0.0, %v633
    %v635 = vpop.f32.mrb[0].mxu0
    %636 = vdwg.mxu0
    %v637 = vlaneseq
    %v638 = vand.u32 %v637, 127
    %v639 = vld [vmem:[%s12] sm:$0xff]
    %v640 = vld [vmem:[%s12 + $0x8] sm:$0xff]
    %v641 = vld [vmem:[%s12 + $0x10] sm:$0xff]
    %v642 = vld [vmem:[%s12 + $0x18] sm:$0xff]
    %v643 = vld [vmem:[%s12 + $0x20] sm:$0xff]
    %v644 = vld [vmem:[%s12 + $0x28] sm:$0xff]
    %v645 = vld [vmem:[%s12 + $0x30] sm:$0xff]
    %v646 = vld [vmem:[%s12 + $0x38] sm:$0xff]
    %647 = vset.pattern.permute.xlu0 0
    %648 = vperm.xlu0 %647, %v639
    %v649 = vpop.permute.xlu0 %648
    %650 = vset.pattern.permute.xlu0 0
    %651 = vperm.xlu0 %650, %v640
    %v652 = vpop.permute.xlu0 %651
    %653 = vset.pattern.permute.xlu0 0
    %654 = vperm.xlu0 %653, %v641
    %v655 = vpop.permute.xlu0 %654
    %656 = vset.pattern.permute.xlu0 0
    %657 = vperm.xlu0 %656, %v642
    %v658 = vpop.permute.xlu0 %657
    %659 = vset.pattern.permute.xlu0 0
    %660 = vperm.xlu0 %659, %v643
    %v661 = vpop.permute.xlu0 %660
    %662 = vset.pattern.permute.xlu0 0
    %663 = vperm.xlu0 %662, %v644
    %v664 = vpop.permute.xlu0 %663
    %665 = vset.pattern.permute.xlu0 0
    %666 = vperm.xlu0 %665, %v645
    %v667 = vpop.permute.xlu0 %666
    %668 = vset.pattern.permute.xlu0 0
    %669 = vperm.xlu0 %668, %v646
    %v670 = vpop.permute.xlu0 %669
    %vm671 = vcmp.ge.s32.totalorder %v638, %v649
    %vm672 = vcmp.ge.s32.totalorder %v638, %v652
    %vm673 = vcmp.ge.s32.totalorder %v638, %v655
    %vm674 = vcmp.ge.s32.totalorder %v638, %v658
    %vm675 = vcmp.ge.s32.totalorder %v638, %v661
    %vm676 = vcmp.ge.s32.totalorder %v638, %v664
    %vm677 = vcmp.ge.s32.totalorder %v638, %v667
    %vm678 = vcmp.ge.s32.totalorder %v638, %v670
    %v679 = vld [vmem:[%s13] sm:$0xff]
    %v680 = vld [vmem:[%s13 + $0x8] sm:$0xff]
    %v681 = vld [vmem:[%s13 + $0x10] sm:$0xff]
    %v682 = vld [vmem:[%s13 + $0x18] sm:$0xff]
    %v683 = vld [vmem:[%s13 + $0x20] sm:$0xff]
    %v684 = vld [vmem:[%s13 + $0x28] sm:$0xff]
    %v685 = vld [vmem:[%s13 + $0x30] sm:$0xff]
    %v686 = vld [vmem:[%s13 + $0x38] sm:$0xff]
    %687 = vset.pattern.permute.xlu0 0
    %688 = vperm.xlu0 %687, %v679
    %v689 = vpop.permute.xlu0 %688
    %690 = vset.pattern.permute.xlu0 0
    %691 = vperm.xlu0 %690, %v680
    %v692 = vpop.permute.xlu0 %691
    %693 = vset.pattern.permute.xlu0 0
    %694 = vperm.xlu0 %693, %v681
    %v695 = vpop.permute.xlu0 %694
    %696 = vset.pattern.permute.xlu0 0
    %697 = vperm.xlu0 %696, %v682
    %v698 = vpop.permute.xlu0 %697
    %699 = vset.pattern.permute.xlu0 0
    %700 = vperm.xlu0 %699, %v683
    %v701 = vpop.permute.xlu0 %700
    %702 = vset.pattern.permute.xlu0 0
    %703 = vperm.xlu0 %702, %v684
    %v704 = vpop.permute.xlu0 %703
    %705 = vset.pattern.permute.xlu0 0
    %706 = vperm.xlu0 %705, %v685
    %v707 = vpop.permute.xlu0 %706
    %708 = vset.pattern.permute.xlu0 0
    %709 = vperm.xlu0 %708, %v686
    %v710 = vpop.permute.xlu0 %709
    %vm711 = vcmp.le.s32.totalorder %v638, %v689
    %vm712 = vcmp.le.s32.totalorder %v638, %v692
    %vm713 = vcmp.le.s32.totalorder %v638, %v695
    %vm714 = vcmp.le.s32.totalorder %v638, %v698
    %vm715 = vcmp.le.s32.totalorder %v638, %v701
    %vm716 = vcmp.le.s32.totalorder %v638, %v704
    %vm717 = vcmp.le.s32.totalorder %v638, %v707
    %vm718 = vcmp.le.s32.totalorder %v638, %v710
    %vm719 = vmand %vm671, %vm711
    %vm720 = vmand %vm672, %vm712
    %vm721 = vmand %vm673, %vm713
    %vm722 = vmand %vm674, %vm714
    %vm723 = vmand %vm675, %vm715
    %vm724 = vmand %vm676, %vm716
    %vm725 = vmand %vm677, %vm717
    %vm726 = vmand %vm678, %vm718
    %v727 = vsel %vm719, %v607, -1e+30
    %v728 = vsel %vm720, %v610, -1e+30
    %v729 = vsel %vm721, %v615, -1e+30
    %v730 = vsel %vm722, %v618, -1e+30
    %v731 = vsel %vm723, %v623, -1e+30
    %v732 = vsel %vm724, %v626, -1e+30
    %v733 = vsel %vm725, %v631, -1e+30
    %v734 = vsel %vm726, %v634, -1e+30
    %v735 = vsel %vm556, %v727, -inf
    %736 = vmax.xlane.f32.xlu0 %v735
    %v737 = vpop.xlane.xlu0 %736
    %v738 = vsel %vm556, %v728, -inf
    %739 = vmax.xlane.f32.xlu0 %v738
    %v740 = vpop.xlane.xlu0 %739
    %v741 = vsel %vm556, %v729, -inf
    %742 = vmax.xlane.f32.xlu0 %v741
    %v743 = vpop.xlane.xlu0 %742
    %v744 = vsel %vm556, %v730, -inf
    %745 = vmax.xlane.f32.xlu0 %v744
    %v746 = vpop.xlane.xlu0 %745
    %v747 = vsel %vm556, %v731, -inf
    %748 = vmax.xlane.f32.xlu0 %v747
    %v749 = vpop.xlane.xlu0 %748
    %v750 = vsel %vm556, %v732, -inf
    %751 = vmax.xlane.f32.xlu0 %v750
    %v752 = vpop.xlane.xlu0 %751
    %v753 = vsel %vm556, %v733, -inf
    %754 = vmax.xlane.f32.xlu0 %v753
    %v755 = vpop.xlane.xlu0 %754
    %v756 = vsel %vm556, %v734, -inf
    %757 = vmax.xlane.f32.xlu0 %v756
    %v758 = vpop.xlane.xlu0 %757
    %v759 = vsub.f32 %v727, %v737
    %v760 = vsub.f32 %v728, %v740
    %v761 = vsub.f32 %v729, %v743
    %v762 = vsub.f32 %v730, %v746
    %v763 = vsub.f32 %v731, %v749
    %v764 = vsub.f32 %v732, %v752
    %v765 = vsub.f32 %v733, %v755
    %v766 = vsub.f32 %v734, %v758
    %v767 = vmul.f32 %v759, 1.442695
    %v768 = vpow.pop %v767
    %v769 = vmul.f32 %v760, 1.442695
    %v770 = vpow.pop %v769
    %v771 = vmul.f32 %v761, 1.442695
    %v772 = vpow.pop %v771
    %v773 = vmul.f32 %v762, 1.442695
    %v774 = vpow.pop %v773
    %v775 = vmul.f32 %v763, 1.442695
    %v776 = vpow.pop %v775
    %v777 = vmul.f32 %v764, 1.442695
    %v778 = vpow.pop %v777
    %v779 = vmul.f32 %v765, 1.442695
    %v780 = vpow.pop %v779
    %v781 = vmul.f32 %v766, 1.442695
    %v782 = vpow.pop %v781
    %v783 = vsel %vm556, %v768, 0.0
    %784 = vadd.xlane.f32.xlu0 %v783
    %v785 = vpop.xlane.xlu0 %784
    %v786 = vsel %vm556, %v770, 0.0
    %787 = vadd.xlane.f32.xlu0 %v786
    %v788 = vpop.xlane.xlu0 %787
    %v789 = vsel %vm556, %v772, 0.0
    %790 = vadd.xlane.f32.xlu0 %v789
    %v791 = vpop.xlane.xlu0 %790
    %v792 = vsel %vm556, %v774, 0.0
    %793 = vadd.xlane.f32.xlu0 %v792
    %v794 = vpop.xlane.xlu0 %793
    %v795 = vsel %vm556, %v776, 0.0
    %796 = vadd.xlane.f32.xlu0 %v795
    %v797 = vpop.xlane.xlu0 %796
    %v798 = vsel %vm556, %v778, 0.0
    %799 = vadd.xlane.f32.xlu0 %v798
    %v800 = vpop.xlane.xlu0 %799
    %v801 = vsel %vm556, %v780, 0.0
    %802 = vadd.xlane.f32.xlu0 %v801
    %v803 = vpop.xlane.xlu0 %802
    %v804 = vsel %vm556, %v782, 0.0
    %805 = vadd.xlane.f32.xlu0 %v804
    %v806 = vpop.xlane.xlu0 %805
    %v807 = vrcp.pop %v785
    %v808 = vrcp.pop %v788
    %v809 = vrcp.pop %v791
    %v810 = vrcp.pop %v794
    %v811 = vrcp.pop %v797
    %v812 = vrcp.pop %v800
    %v813 = vrcp.pop %v803
    %v814 = vrcp.pop %v806
    %v815 = vmul.f32 %v768, %v807
    %v816 = vmul.f32 %v770, %v808
    %v817 = vmul.f32 %v772, %v809
    %v818 = vmul.f32 %v774, %v810
    %v819 = vmul.f32 %v776, %v811
    %v820 = vmul.f32 %v778, %v812
    %v821 = vmul.f32 %v780, %v813
    %v822 = vmul.f32 %v782, %v814
    %v823 = vpack.c.bf16 %v816, %v815
    %v824 = vpack.c.bf16 %v818, %v817
    %v825 = vpack.c.bf16 %v820, %v819
    %v826 = vpack.c.bf16 %v822, %v821
    %v827 = vpack.c.bf16 %v383, %v380
    %v829 = vsel %vm556, %v823, 0
    %v832 = vsel %vm556, %v824, 0
    %v835 = vsel %vm556, %v825, 0
    %v838 = vsel %vm556, %v826, 0
    %840 = vmatprep.subr.bf16.mxu0 0
    %841 = vmatpush1.bf16.msra.mxu0 %v827
    %842 = vmatprep.subr.bf16.mxu0 0
    %843 = vmatpush1.bf16.msra.mxu0 0
    %844 = vmatprep.subr.bf16.mxu0 0
    %845 = vmatpush1.bf16.msra.mxu0 0
    %846 = vmatprep.subr.bf16.mxu0 0
    %847 = vmatpush1.bf16.msra.mxu0 0
    %848 = vmatprep.subr.bf16.mxu0 0
    %849 = vmatpush1.bf16.msra.mxu0 0
    %850 = vmatprep.subr.bf16.mxu0 0
    %851 = vmatpush1.bf16.msra.mxu0 0
    %852 = vmatprep.subr.bf16.mxu0 0
    %853 = vmatpush1.bf16.msra.mxu0 0
    %854 = vmatprep.subr.bf16.mxu0 0
    %855 = vmatpush1.bf16.msra.mxu0 0
    %856 = vmatprep.subr.bf16.mxu0 0
    %857 = vmatpush1.bf16.msra.mxu0 0
    %858 = vmatprep.subr.bf16.mxu0 0
    %859 = vmatpush1.bf16.msra.mxu0 0
    %860 = vmatprep.subr.bf16.mxu0 0
    %861 = vmatpush1.bf16.msra.mxu0 0
    %862 = vmatprep.subr.bf16.mxu0 0
    %863 = vmatpush1.bf16.msra.mxu0 0
    %864 = vmatprep.subr.bf16.mxu0 0
    %865 = vmatpush1.bf16.msra.mxu0 0
    %866 = vmatprep.subr.bf16.mxu0 0
    %867 = vmatpush1.bf16.msra.mxu0 0
    %868 = vmatprep.subr.bf16.mxu0 0
    %869 = vmatpush1.bf16.msra.mxu0 0
    %870 = vmatprep.subr.bf16.mxu0 0
    %871 = vmatpush1.bf16.msra.mxu0 0
    %872 = vmatprep.mubr.bf16.mxu0 0
    %873 = vmatmul.mubr.bf16.gmra.mrb[0].mxu0 %v829
    %v874 = vpop.f32.mrb[0].mxu0
    %v875 = vadd.f32 0.0, %v874
    %v876 = vpop.f32.mrb[0].mxu0
    %v877 = vpop.f32.mrb[0].mxu0
    %v878 = vadd.f32 0.0, %v877
    %v879 = vpop.f32.mrb[0].mxu0
    %880 = vmatprep.mubr.bf16.mxu0 0
    %881 = vmatmul.mubr.bf16.gmra.mrb[0].mxu0 %v832
    %v882 = vpop.f32.mrb[0].mxu0
    %v883 = vadd.f32 0.0, %v882
    %v884 = vpop.f32.mrb[0].mxu0
    %v885 = vpop.f32.mrb[0].mxu0
    %v886 = vadd.f32 0.0, %v885
    %v887 = vpop.f32.mrb[0].mxu0
    %888 = vmatprep.mubr.bf16.mxu0 0
    %889 = vmatmul.mubr.bf16.gmra.mrb[0].mxu0 %v835
    %v890 = vpop.f32.mrb[0].mxu0
    %v891 = vadd.f32 0.0, %v890
    %v892 = vpop.f32.mrb[0].mxu0
    %v893 = vpop.f32.mrb[0].mxu0
    %v894 = vadd.f32 0.0, %v893
    %v895 = vpop.f32.mrb[0].mxu0
    %896 = vmatprep.mubr.bf16.mxu0 0
    %897 = vmatmul.mubr.bf16.gmra.mrb[0].mxu0 %v838
    %v898 = vpop.f32.mrb[0].mxu0
    %v899 = vadd.f32 0.0, %v898
    %v900 = vpop.f32.mrb[0].mxu0
    %v901 = vpop.f32.mrb[0].mxu0
    %v902 = vadd.f32 0.0, %v901
    %v903 = vpop.f32.mrb[0].mxu0
    %904 = vdwg.mxu0
    %907 = vrot.lane.b32.xlu0 %v883, 16
    %v908 = vpop.permute.xlu0 %907
    %909 = vrot.lane.b32.xlu0 %v886, 16
    %v910 = vpop.permute.xlu0 %909
    %915 = vrot.lane.b32.xlu0 %v891, 32
    %v916 = vpop.permute.xlu0 %915
    %917 = vrot.lane.b32.xlu0 %v894, 32
    %v918 = vpop.permute.xlu0 %917
    %923 = vrot.lane.b32.xlu0 %v899, 48
    %v924 = vpop.permute.xlu0 %923
    %925 = vrot.lane.b32.xlu0 %v902, 48
    %v926 = vpop.permute.xlu0 %925
    %v929 = vsel %vm556, %v875, %v908
    %v930 = vsel %vm556, %v878, %v910
    %v931 = vsel %vm51, %v929, %v916
    %v932 = vsel %vm51, %v930, %v918
    %vm933 = vcmask 392192
    %v934 = vsel %vm933, %v931, %v924
    %v935 = vsel %vm933, %v932, %v926
    %v936 = vxor.u32 %v447, 2147483648
    %v937 = vxor.u32 %v451, 2147483648
    %v938 = vmul.f32 %v936, 1.442695
    %v939 = vpow.pop %v938
    %v940 = vmul.f32 %v937, 1.442695
    %v941 = vpow.pop %v940
    %v942 = vadd.f32 %v939, 1.0
    %v943 = vadd.f32 %v941, 1.0
    %v944 = vrcp.pop %v942
    %v945 = vmul.f32 1.0, %v944
    %v946 = vrcp.pop %v943
    %v947 = vmul.f32 1.0, %v946
    %v948 = vmul.f32 %v447, %v945
    %v949 = vmul.f32 %v451, %v947
    %v950 = vmul.f32 %v948, %v445
    %v951 = vmul.f32 %v949, %v449
    %v952 = vpack.c.bf16 %v951, %v950
    %v953 = vpack.c.bf16 %v935, %v934
    %v954 = vld [vmem:[%s7] sm:$0xf]
    %v955 = vld [vmem:[%s7 + $0x4] sm:$0xf]
    %v956 = vld [vmem:[%s7 + $0x8] sm:$0xf]
    %v957 = vld [vmem:[%s7 + $0xc] sm:$0xf]
    %v958 = vld [vmem:[%s7 + $0x10] sm:$0xf]
    %v959 = vld [vmem:[%s7 + $0x14] sm:$0xf]
    %v960 = vld [vmem:[%s7 + $0x18] sm:$0xf]
    %v961 = vld [vmem:[%s7 + $0x1c] sm:$0xf]
    %v962 = vld [vmem:[%s7 + $0x20] sm:$0xf]
    %v963 = vld [vmem:[%s7 + $0x24] sm:$0xf]
    %v964 = vld [vmem:[%s7 + $0x28] sm:$0xf]
    %v965 = vld [vmem:[%s7 + $0x2c] sm:$0xf]
    %v966 = vld [vmem:[%s7 + $0x30] sm:$0xf]
    %v967 = vld [vmem:[%s7 + $0x34] sm:$0xf]
    %v968 = vld [vmem:[%s7 + $0x38] sm:$0xf]
    %v969 = vld [vmem:[%s7 + $0x3c] sm:$0xf]
    %v970 = vld [vmem:[%s7 + $0x40] sm:$0xf]
    %v971 = vld [vmem:[%s7 + $0x44] sm:$0xf]
    %v972 = vld [vmem:[%s7 + $0x48] sm:$0xf]
    %v973 = vld [vmem:[%s7 + $0x4c] sm:$0xf]
    %v974 = vld [vmem:[%s7 + $0x50] sm:$0xf]
    %v975 = vld [vmem:[%s7 + $0x54] sm:$0xf]
    %v976 = vld [vmem:[%s7 + $0x58] sm:$0xf]
    %v977 = vld [vmem:[%s7 + $0x5c] sm:$0xf]
    %v1002 = vunpack.c.l.b16 %v954
    %v1003 = vunpack.c.l.b16 %v955
    %v1004 = vunpack.c.l.b16 %v956
    %v1005 = vunpack.c.l.b16 %v957
    %v1006 = vunpack.c.l.b16 %v958
    %v1007 = vunpack.c.l.b16 %v959
    %v1008 = vunpack.c.l.b16 %v960
    %v1009 = vunpack.c.l.b16 %v961
    %v1010 = vunpack.c.l.b16 %v962
    %v1011 = vunpack.c.l.b16 %v963
    %v1012 = vunpack.c.l.b16 %v964
    %v1013 = vunpack.c.l.b16 %v965
    %v1014 = vunpack.c.l.b16 %v966
    %v1015 = vunpack.c.l.b16 %v967
    %v1016 = vunpack.c.l.b16 %v968
    %v1017 = vunpack.c.l.b16 %v969
    %v1018 = vunpack.c.l.b16 %v970
    %v1019 = vunpack.c.l.b16 %v971
    %v1020 = vunpack.c.l.b16 %v972
    %v1021 = vunpack.c.l.b16 %v973
    %v1022 = vunpack.c.l.b16 %v974
    %v1023 = vunpack.c.l.b16 %v975
    %v1024 = vunpack.c.l.b16 %v976
    %v1025 = vunpack.c.l.b16 %v977
    %v1026 = vpack.c.b16 %v1003, %v1002
    %v1027 = vpack.c.b16 %v1005, %v1004
    %v1028 = vpack.c.b16 %v1007, %v1006
    %v1029 = vpack.c.b16 %v1009, %v1008
    %v1030 = vpack.c.b16 %v1011, %v1010
    %v1031 = vpack.c.b16 %v1013, %v1012
    %v1032 = vpack.c.b16 %v1015, %v1014
    %v1033 = vpack.c.b16 %v1017, %v1016
    %v1034 = vpack.c.b16 %v1019, %v1018
    %v1035 = vpack.c.b16 %v1021, %v1020
    %v1036 = vpack.c.b16 %v1023, %v1022
    %v1037 = vpack.c.b16 %v1025, %v1024
    %vm1050 = vcmask 523264
    %v1052 = vsel %vm1050, %v953, 0
    %1054 = vmatprep.subr.bf16.mxu0 0
    %1055 = vmatpush1.bf16.msra.mxu0 %v1026
    %1056 = vmatprep.subr.bf16.mxu0 0
    %1057 = vmatpush1.bf16.msra.mxu0 %v1027
    %1058 = vmatprep.subr.bf16.mxu0 0
    %1059 = vmatpush1.bf16.msra.mxu0 %v1028
    %1060 = vmatprep.subr.bf16.mxu0 0
    %1061 = vmatpush1.bf16.msra.mxu0 %v1029
    %1062 = vmatprep.subr.bf16.mxu0 0
    %1063 = vmatpush1.bf16.msra.mxu0 %v1030
    %1064 = vmatprep.subr.bf16.mxu0 0
    %1065 = vmatpush1.bf16.msra.mxu0 %v1031
    %1066 = vmatprep.subr.bf16.mxu0 0
    %1067 = vmatpush1.bf16.msra.mxu0 %v1032
    %1068 = vmatprep.subr.bf16.mxu0 0
    %1069 = vmatpush1.bf16.msra.mxu0 %v1033
    %1070 = vmatprep.subr.bf16.mxu0 0
    %1071 = vmatpush1.bf16.msra.mxu0 %v1034
    %1072 = vmatprep.subr.bf16.mxu0 0
    %1073 = vmatpush1.bf16.msra.mxu0 %v1035
    %1074 = vmatprep.subr.bf16.mxu0 0
    %1075 = vmatpush1.bf16.msra.mxu0 %v1036
    %1076 = vmatprep.subr.bf16.mxu0 0
    %1077 = vmatpush1.bf16.msra.mxu0 %v1037
    %1078 = vmatprep.subr.bf16.mxu0 0
    %1079 = vmatpush1.bf16.msra.mxu0 0
    %1080 = vmatprep.subr.bf16.mxu0 0
    %1081 = vmatpush1.bf16.msra.mxu0 0
    %1082 = vmatprep.subr.bf16.mxu0 0
    %1083 = vmatpush1.bf16.msra.mxu0 0
    %1084 = vmatprep.subr.bf16.mxu0 0
    %1085 = vmatpush1.bf16.msra.mxu0 0
    %1086 = vmatprep.mubr.bf16.mxu0 %v1052
    %1087 = vmatmul.mubr.bf16.gmra.mrb[0].mxu0 %v952
    %v1088 = vpop.f32.mrb[0].mxu0
    %v1089 = vadd.f32 0.0, %v1088
    %v1090 = vpop.f32.mrb[0].mxu0
    %v1091 = vpop.f32.mrb[0].mxu0
    %v1092 = vadd.f32 0.0, %v1091
    %v1093 = vpop.f32.mrb[0].mxu0
    %1094 = vdwg.mxu0
    %1095 = vst.msk [vmem:[#allocation2] sm:$0xff] %vm51, %v1089
    %1096 = vst.msk [vmem:[#allocation2 + $0x8] sm:$0xff] %vm51, %v1092
    // Predicated region
    $region58: #{tpu_custom_call.1} parent=1 // pred_check
      _
    $region59: #{tpu_custom_call.1} parent=1 // pred_check_branch
      %1098 = sbr.rel (0) target = $region61
    $region60: #{tpu_custom_call.1} parent=1 // pred_region
      %s1100 = ssub.s32 256, 256
      %1101 = vsyncadd [#allocation3], %s1100
      %s1102 = sshll.u32 [#allocation2], 4
      %s1103 = int_to_ptr.vmem [resolvable:$true] %s1102
      %1108 = dma.vmem_to_hbm [thread:$0]  %s1103, 256, %s14, [#allocation3], 128, 128, 8
    $region61: #{tpu_custom_call.1} parent=1 // pred_fallthru
      _
    // Predicated region
    $region62: #{tpu_custom_call.1} parent=1 // pred_check
      _
    $region63: #{tpu_custom_call.1} parent=1 // pred_check_branch
      %1110 = sbr.rel (0) target = $region65
    $region64: #{tpu_custom_call.1} parent=1 // pred_region
      %1111 = dma.done [#allocation3], 256
    $region65: #{tpu_custom_call.1} parent=1 // pred_fallthru
      _
    %1112 = vsyncpa [#allocation3], 1

</llo_original>
